<compile_context>
chip_gen: v7x
topology: tpu7x:2x2x1
jax: 0.10.0
libtpu: 0.0.40
codegen_flags: <defaults>
</compile_context>

<pallas_src>
import jax
import jax.numpy as jnp
from jax.experimental import pallas as pl
from jax.experimental.pallas import tpu as pltpu


def _round_up(x, m):
    return (x + m - 1) // m * m


def mlp_kernel(x_ref, w1_ref, b1_ref, w2_ref, b2_ref, w3_ref, b3_ref, out_ref):
    # One batch tile: (TB, Dp) -> (TB, NFp) -> (TB, NFp) -> (TB, NCp), fully
    # fused.  bf16 MXU inputs, f32 accumulation, f32 bias/ReLU epilogues.
    h = jnp.dot(x_ref[...], w1_ref[...], preferred_element_type=jnp.float32)
    h = jnp.maximum(h + b1_ref[...], 0.0)
    h = jnp.dot(h.astype(jnp.bfloat16), w2_ref[...],
                preferred_element_type=jnp.float32)
    h = jnp.maximum(h + b2_ref[...], 0.0)
    out_ref[...] = (jnp.dot(h.astype(jnp.bfloat16), w3_ref[...],
                            preferred_element_type=jnp.float32)
                    + b3_ref[...])


def prepare_mlp_params(w1, b1, w2, b2, w3, b3):
    """One-time parameter prep (hoisted out of the per-call forward path).

    Transposes the PyTorch Linear weights, zero-pads every contraction/output
    dim to a multiple of 128, and casts the weights to bfloat16.  Padding with
    zero rows/cols and zero bias entries is an exact no-op through ReLU.
    Weights: w1 (nf, D), w2 (nf, nf), w3 (nc, nf); biases (nf,), (nf,), (nc,).
    """
    nf, D = w1.shape
    nc = w3.shape[0]
    Dp, NFp, NCp = _round_up(D, 128), _round_up(nf, 128), _round_up(nc, 128)

    w1p = jnp.zeros((Dp, NFp), jnp.bfloat16).at[:D, :nf].set(
        w1.T.astype(jnp.bfloat16))
    w2p = jnp.zeros((NFp, NFp), jnp.bfloat16).at[:nf, :nf].set(
        w2.T.astype(jnp.bfloat16))
    w3p = jnp.zeros((NFp, NCp), jnp.bfloat16).at[:nf, :nc].set(
        w3.T.astype(jnp.bfloat16))
    b1p = jnp.zeros((1, NFp), jnp.float32).at[0, :nf].set(b1.astype(jnp.float32))
    b2p = jnp.zeros((1, NFp), jnp.float32).at[0, :nf].set(b2.astype(jnp.float32))
    b3p = jnp.zeros((1, NCp), jnp.float32).at[0, :nc].set(b3.astype(jnp.float32))

    return {"w1": w1p, "b1": b1p, "w2": w2p, "b2": b2p, "w3": w3p, "b3": b3p}


def _pick_batch_tile(B, block_b):
    """Batch tile: multiple of 8; keep >= 2 grid tiles when the batch allows
    (only the parallel grid axis shards across v7x's 2 TensorCores)."""
    Bp8 = _round_up(B, 8)
    if Bp8 < 16:
        return Bp8
    return max(8, min(block_b, _round_up(pl.cdiv(Bp8, 2), 8)))


def mlp_forward(x, params, *, nc, block_b=512):
    """Forward pass of the PyTorch MLP.

    x: any shape with leading batch dim; flattened to (B, D).
    params: output of prepare_mlp_params().  Returns (B, nc) float32.
    """
    w1p, b1p = params["w1"], params["b1"]
    w2p, b2p = params["w2"], params["b2"]
    w3p, b3p = params["w3"], params["b3"]
    Dp, NFp = w1p.shape
    NCp = w3p.shape[1]

    B = x.shape[0]
    x2 = x.reshape(B, -1)
    D = x2.shape[1]
    assert D <= Dp, "flattened input size must match first Linear"

    TB = _pick_batch_tile(B, block_b)
    Bp = _round_up(B, TB)

    xb = x2.astype(jnp.bfloat16)
    if Bp != B or Dp != D:
        # Only pay the padding copy when actually needed (D=1024 is already
        # lane-aligned; padding rows produce garbage rows sliced off below).
        xb = jnp.pad(xb, ((0, Bp - B), (0, Dp - D)))

    grid = (Bp // TB,)
    flops = 2 * Bp * (Dp * NFp + NFp * NFp + NFp * NCp)
    bytes_accessed = (Bp * Dp * 2
                      + (w1p.size + w2p.size + w3p.size) * 2
                      + (b1p.size + b2p.size + b3p.size) * 4
                      + Bp * NCp * 4)

    # Weights/biases are fetched once (constant index_map) -> 1 buffer is enough.
    resident = dict(pipeline_mode=pl.Buffered(1))

    out_padded = pl.pallas_call(
        mlp_kernel,
        out_shape=jax.ShapeDtypeStruct((Bp, NCp), jnp.float32),
        grid=grid,
        in_specs=[
            pl.BlockSpec((TB, Dp), lambda i: (i, 0)),                 # x tile
            pl.BlockSpec((Dp, NFp), lambda i: (0, 0), **resident),    # W1
            pl.BlockSpec((1, NFp), lambda i: (0, 0), **resident),     # b1
            pl.BlockSpec((NFp, NFp), lambda i: (0, 0), **resident),   # W2
            pl.BlockSpec((1, NFp), lambda i: (0, 0), **resident),     # b2
            pl.BlockSpec((NFp, NCp), lambda i: (0, 0), **resident),   # W3
            pl.BlockSpec((1, NCp), lambda i: (0, 0), **resident),     # b3
        ],
        out_specs=pl.BlockSpec((TB, NCp), lambda i: (i, 0)),
        compiler_params=pltpu.CompilerParams(
            dimension_semantics=("parallel",)),
        cost_estimate=pl.CostEstimate(
            flops=flops, transcendentals=0, bytes_accessed=bytes_accessed),
    )(xb, w1p, b1p, w2p, b2p, w3p, b3p)

    return out_padded[:B, :nc]


def _reference(x, w1, b1, w2, b2, w3, b3):
    """Pure-JAX f32 reference matching the PyTorch MLP forward."""
    h = x.reshape(x.shape[0], -1).astype(jnp.float32)
    h = jax.nn.relu(h @ w1.T + b1)
    h = jax.nn.relu(h @ w2.T + b2)
    return h @ w3.T + b3


if __name__ == "__main__":
    key = jax.random.PRNGKey(0)
    ks = jax.random.split(key, 7)

    # args.input_size = (4, 16, 16) -> input_size = 1024; nf = 400; 10 classes.
    B, C, H, W = 2, 4, 16, 16
    D, NF, NC = C * H * W, 400, 10

    x = jax.random.normal(ks[0], (B, C, H, W), jnp.float32)
    s1, s2 = 1.0 / (D ** 0.5), 1.0 / (NF ** 0.5)
    w1 = jax.random.uniform(ks[1], (NF, D), jnp.float32, -s1, s1)
    b1 = jax.random.uniform(ks[2], (NF,), jnp.float32, -s1, s1)
    w2 = jax.random.uniform(ks[3], (NF, NF), jnp.float32, -s2, s2)
    b2 = jax.random.uniform(ks[4], (NF,), jnp.float32, -s2, s2)
    w3 = jax.random.uniform(ks[5], (NC, NF), jnp.float32, -s2, s2)
    b3 = jax.random.uniform(ks[6], (NC,), jnp.float32, -s2, s2)

    # One-time weight prep (transpose + pad + bf16), then a jitted forward that
    # only touches the activation per call.
    params = prepare_mlp_params(w1, b1, w2, b2, w3, b3)
    params = jax.tree_util.tree_map(jax.block_until_ready, params)
    fwd = jax.jit(lambda xx, pp: mlp_forward(xx, pp, nc=NC))

    out = fwd(x, params)
    jax.block_until_ready(out)

    ref = _reference(x, w1, b1, w2, b2, w3, b3)
    assert out.shape == ref.shape == (B, NC)
    err = float(jnp.max(jnp.abs(out - ref)))
    # bf16 MXU inputs with f32 accumulation; tolerance loosened accordingly.
    assert err < 2e-2, f"mismatch vs pure-JAX reference: {err}"

    print("KERNEL_OK")
</pallas_src>

<mosaic_0001>
module attributes {stable_mosaic.version = 11 : i64} {
  func.func @mlp_kernel(%arg0: i32, %arg1: memref<8x1024xbf16, #tpu.memory_space<vmem>>, %arg2: memref<1024x512xbf16, #tpu.memory_space<vmem>>, %arg3: memref<1x512xf32, #tpu.memory_space<vmem>>, %arg4: memref<512x512xbf16, #tpu.memory_space<vmem>>, %arg5: memref<1x512xf32, #tpu.memory_space<vmem>>, %arg6: memref<512x128xbf16, #tpu.memory_space<vmem>>, %arg7: memref<1x128xf32, #tpu.memory_space<vmem>>, %arg8: memref<8x128xf32, #tpu.memory_space<vmem>>) attributes {dimension_semantics = [#tpu.dimension_semantics<parallel>], iteration_bounds = array<i64: 1>, scalar_prefetch = 0 : i64, scratch_operands = 0 : i64, tpu.core_type = #tpu.core_type<tc>, window_params = [{transform_indices = @transform_0, window_bounds = array<i64: 8, 1024>}, {pipeline_mode = #tpu.pipeline_mode<synchronous>, transform_indices = @transform_1, window_bounds = array<i64: 1024, 512>}, {pipeline_mode = #tpu.pipeline_mode<synchronous>, transform_indices = @transform_2, window_bounds = array<i64: 1, 512>}, {pipeline_mode = #tpu.pipeline_mode<synchronous>, transform_indices = @transform_3, window_bounds = array<i64: 512, 512>}, {pipeline_mode = #tpu.pipeline_mode<synchronous>, transform_indices = @transform_4, window_bounds = array<i64: 1, 512>}, {pipeline_mode = #tpu.pipeline_mode<synchronous>, transform_indices = @transform_5, window_bounds = array<i64: 512, 128>}, {pipeline_mode = #tpu.pipeline_mode<synchronous>, transform_indices = @transform_6, window_bounds = array<i64: 1, 128>}, {transform_indices = @transform_7, window_bounds = array<i64: 8, 128>}]} {
    %c0 = arith.constant 0 : index
    %c0_0 = arith.constant 0 : index
    %0 = vector.load %arg1[%c0, %c0_0] : memref<8x1024xbf16, #tpu.memory_space<vmem>>, vector<8x1024xbf16>
    %c0_1 = arith.constant 0 : index
    %c0_2 = arith.constant 0 : index
    %1 = vector.load %arg2[%c0_1, %c0_2] : memref<1024x512xbf16, #tpu.memory_space<vmem>>, vector<1024x512xbf16>
    %cst = arith.constant dense<0.000000e+00> : vector<8x512xf32>
    %2 = tpu.matmul %0, %1, %cst {dimension_numbers = #tpu.dot_dimension_numbers<[1], [0], [0], [1], [0, 0, 1, 1], [], []>} : vector<8x1024xbf16>, vector<1024x512xbf16>, vector<8x512xf32> -> vector<8x512xf32>
    %c0_3 = arith.constant 0 : index
    %c0_4 = arith.constant 0 : index
    %3 = vector.load %arg3[%c0_3, %c0_4] : memref<1x512xf32, #tpu.memory_space<vmem>>, vector<1x512xf32>
    %4 = vector.broadcast %3 : vector<1x512xf32> to vector<8x512xf32>
    %5 = arith.addf %2, %4 : vector<8x512xf32>
    %cst_5 = arith.constant 0.000000e+00 : f32
    %6 = vector.broadcast %cst_5 : f32 to vector<8x512xf32>
    %7 = arith.maximumf %5, %6 : vector<8x512xf32>
    %8 = arith.truncf %7 : vector<8x512xf32> to vector<8x512xbf16>
    %c0_6 = arith.constant 0 : index
    %c0_7 = arith.constant 0 : index
    %9 = vector.load %arg4[%c0_6, %c0_7] : memref<512x512xbf16, #tpu.memory_space<vmem>>, vector<512x512xbf16>
    %cst_8 = arith.constant dense<0.000000e+00> : vector<8x512xf32>
    %10 = tpu.matmul %8, %9, %cst_8 {dimension_numbers = #tpu.dot_dimension_numbers<[1], [0], [0], [1], [0, 0, 1, 1], [], []>} : vector<8x512xbf16>, vector<512x512xbf16>, vector<8x512xf32> -> vector<8x512xf32>
    %c0_9 = arith.constant 0 : index
    %c0_10 = arith.constant 0 : index
    %11 = vector.load %arg5[%c0_9, %c0_10] : memref<1x512xf32, #tpu.memory_space<vmem>>, vector<1x512xf32>
    %12 = vector.broadcast %11 : vector<1x512xf32> to vector<8x512xf32>
    %13 = arith.addf %10, %12 : vector<8x512xf32>
    %cst_11 = arith.constant 0.000000e+00 : f32
    %14 = vector.broadcast %cst_11 : f32 to vector<8x512xf32>
    %15 = arith.maximumf %13, %14 : vector<8x512xf32>
    %16 = arith.truncf %15 : vector<8x512xf32> to vector<8x512xbf16>
    %c0_12 = arith.constant 0 : index
    %c0_13 = arith.constant 0 : index
    %17 = vector.load %arg6[%c0_12, %c0_13] : memref<512x128xbf16, #tpu.memory_space<vmem>>, vector<512x128xbf16>
    %cst_14 = arith.constant dense<0.000000e+00> : vector<8x128xf32>
    %18 = tpu.matmul %16, %17, %cst_14 {dimension_numbers = #tpu.dot_dimension_numbers<[1], [0], [0], [1], [0, 0, 1, 1], [], []>} : vector<8x512xbf16>, vector<512x128xbf16>, vector<8x128xf32> -> vector<8x128xf32>
    %c0_15 = arith.constant 0 : index
    %c0_16 = arith.constant 0 : index
    %19 = vector.load %arg7[%c0_15, %c0_16] : memref<1x128xf32, #tpu.memory_space<vmem>>, vector<1x128xf32>
    %20 = vector.broadcast %19 : vector<1x128xf32> to vector<8x128xf32>
    %21 = arith.addf %18, %20 : vector<8x128xf32>
    %c0_17 = arith.constant 0 : index
    %c0_18 = arith.constant 0 : index
    %22 = vector.load %arg8[%c0_17, %c0_18] : memref<8x128xf32, #tpu.memory_space<vmem>>, vector<8x128xf32>
    tpu.vector_store %arg8[%c0_17, %c0_18], %21 {strides = array<i32>} : memref<8x128xf32, #tpu.memory_space<vmem>>, vector<8x128xf32>,
    return
  }
  func.func @transform_0(%arg0: i32) -> (i32, i32) {
    %c0_i32 = arith.constant 0 : i32
    %c0_i32_0 = arith.constant 0 : i32
    return %arg0, %c0_i32 : i32, i32
  }
  func.func @transform_1(%arg0: i32) -> (i32, i32) {
    %c0_i32 = arith.constant 0 : i32
    %c0_i32_0 = arith.constant 0 : i32
    %c0_i32_1 = arith.constant 0 : i32
    return %c0_i32, %c0_i32_0 : i32, i32
  }
  func.func @transform_2(%arg0: i32) -> (i32, i32) {
    %c0_i32 = arith.constant 0 : i32
    %c0_i32_0 = arith.constant 0 : i32
    %c0_i32_1 = arith.constant 0 : i32
    return %c0_i32, %c0_i32_0 : i32, i32
  }
  func.func @transform_3(%arg0: i32) -> (i32, i32) {
    %c0_i32 = arith.constant 0 : i32
    %c0_i32_0 = arith.constant 0 : i32
    %c0_i32_1 = arith.constant 0 : i32
    return %c0_i32, %c0_i32_0 : i32, i32
  }
  func.func @transform_4(%arg0: i32) -> (i32, i32) {
    %c0_i32 = arith.constant 0 : i32
    %c0_i32_0 = arith.constant 0 : i32
    %c0_i32_1 = arith.constant 0 : i32
    return %c0_i32, %c0_i32_0 : i32, i32
  }
  func.func @transform_5(%arg0: i32) -> (i32, i32) {
    %c0_i32 = arith.constant 0 : i32
    %c0_i32_0 = arith.constant 0 : i32
    %c0_i32_1 = arith.constant 0 : i32
    return %c0_i32, %c0_i32_0 : i32, i32
  }
  func.func @transform_6(%arg0: i32) -> (i32, i32) {
    %c0_i32 = arith.constant 0 : i32
    %c0_i32_0 = arith.constant 0 : i32
    %c0_i32_1 = arith.constant 0 : i32
    return %c0_i32, %c0_i32_0 : i32, i32
  }
  func.func @transform_7(%arg0: i32) -> (i32, i32) {
    %c0_i32 = arith.constant 0 : i32
    %c0_i32_0 = arith.constant 0 : i32
    return %arg0, %c0_i32 : i32, i32
  }
}

</mosaic_0001>

<llo_original>
// kernel: _lambda_.1
$region0: #{_lambda_.1}
  #allocation0 [shape = 'u32[]', space=smem, size = 0x4, offset = 0x4, fixed_abs, tag = 'smem constant byte address 0x4 - core index']
  #allocation1 [shape = 'u32[144,128]{1,0:T(1,128)}', space=vmem, size = 0x12000, scoped, tag = 'internal scratch']
  %s0 = inlined_call_operand.vmem [shape: bf16[8,1024], index: 0, kind: input, shape index: {}]
  %s1 = inlined_call_operand.hbm [shape: bf16[1024,512], index: 1, kind: input, shape index: {}]
  %s2 = inlined_call_operand.vmem [shape: f32[1,512], index: 2, kind: input, shape index: {}]
  %s3 = inlined_call_operand.hbm [shape: bf16[512,512], index: 3, kind: input, shape index: {}]
  %s4 = inlined_call_operand.vmem [shape: f32[1,512], index: 4, kind: input, shape index: {}]
  %s5 = inlined_call_operand.vmem [shape: bf16[512,128], index: 5, kind: input, shape index: {}]
  %s6 = inlined_call_operand.vmem [shape: f32[1,128], index: 6, kind: input, shape index: {}]
  %s7 = inlined_call_operand.vmem [shape: f32[8,128], index: 7, kind: output, shape index: {}]
  %s8 = sld [smem:[#allocation0]]
  $region46: #{_lambda_.1} parent=0
    _
  %s10 = ssub.s32 1, %s8
  %s11 = scalar_select 0, %s10, %s8
  $region1: #{_lambda_.1} parent=0
    #allocation2 [shape = 'u8[1048576]{0}', space=vmem, size = 0x100000, scoped, tag = 'input window, operand 1, single buffered']
    #allocation3 [shape = 's32[1]{0}', space=sflag, size = 0x4, scoped, tag = 'scoped memory for _lambda_.1']
    #allocation4 [shape = 'u8[524288]{0}', space=vmem, size = 0x80000, scoped, tag = 'input window, operand 3, single buffered']
    #allocation5 [shape = 's32[1]{0}', space=sflag, size = 0x4, scoped, tag = 'scoped memory for _lambda_.1']
    %12 = vsyncpa [#allocation3], 0
    %13 = vsyncpa [#allocation5], 0
    // Predicated region
    $region2: #{_lambda_.1} parent=1 // pred_check
      _
    $region3: #{_lambda_.1} parent=1 // pred_check_branch
      %15 = sbr.rel (0) target = $region5
    $region4: #{_lambda_.1} parent=1 // pred_region
      _
    $region5: #{_lambda_.1} parent=1 // pred_fallthru
      _
    // Predicated region
    $region6: #{_lambda_.1} parent=1 // pred_check
      _
    $region7: #{_lambda_.1} parent=1 // pred_check_branch
      %17 = sbr.rel (0) target = $region9
    $region8: #{_lambda_.1} parent=1 // pred_region
      %s19 = ssub.s32 32768, 32768
      %20 = vsyncadd [#allocation3], %s19
      %s21 = sshll.u32 [#allocation2], 4
      %s22 = int_to_ptr.vmem [resolvable:$true] %s21
      %27 = dma.hbm_to_vmem [thread:$0]  %s1, 32768, %s22, [#allocation3], 256, 256, 16
    $region9: #{_lambda_.1} parent=1 // pred_fallthru
      _
    // Predicated region
    $region10: #{_lambda_.1} parent=1 // pred_check
      _
    $region11: #{_lambda_.1} parent=1 // pred_check_branch
      %29 = sbr.rel (0) target = $region13
    $region12: #{_lambda_.1} parent=1 // pred_region
      _
    $region13: #{_lambda_.1} parent=1 // pred_fallthru
      _
    // Predicated region
    $region14: #{_lambda_.1} parent=1 // pred_check
      _
    $region15: #{_lambda_.1} parent=1 // pred_check_branch
      %31 = sbr.rel (0) target = $region17
    $region16: #{_lambda_.1} parent=1 // pred_region
      %s33 = ssub.s32 16384, 16384
      %34 = vsyncadd [#allocation5], %s33
      %s35 = sshll.u32 [#allocation4], 4
      %s36 = int_to_ptr.vmem [resolvable:$true] %s35
      %41 = dma.hbm_to_vmem [thread:$0]  %s3, 16384, %s36, [#allocation5], 256, 256, 16
    $region17: #{_lambda_.1} parent=1 // pred_fallthru
      _
    // Predicated region
    $region18: #{_lambda_.1} parent=1 // pred_check
      _
    $region19: #{_lambda_.1} parent=1 // pred_check_branch
      %43 = sbr.rel (0) target = $region21
    $region20: #{_lambda_.1} parent=1 // pred_region
      _
    $region21: #{_lambda_.1} parent=1 // pred_fallthru
      _
    // Predicated region
    $region22: #{_lambda_.1} parent=1 // pred_check
      _
    $region23: #{_lambda_.1} parent=1 // pred_check_branch
      %45 = sbr.rel (0) target = $region25
    $region24: #{_lambda_.1} parent=1 // pred_region
      _
    $region25: #{_lambda_.1} parent=1 // pred_fallthru
      _
    // Predicated region
    $region26: #{_lambda_.1} parent=1 // pred_check
      _
    $region27: #{_lambda_.1} parent=1 // pred_check_branch
      %47 = sbr.rel (0) target = $region29
    $region28: #{_lambda_.1} parent=1 // pred_region
      _
    $region29: #{_lambda_.1} parent=1 // pred_fallthru
      _
    // Predicated region
    $region30: #{_lambda_.1} parent=1 // pred_check
      _
    $region31: #{_lambda_.1} parent=1 // pred_check_branch
      %49 = sbr.rel (0) target = $region33
    $region32: #{_lambda_.1} parent=1 // pred_region
      %50 = dma.done [#allocation3], 32768
    $region33: #{_lambda_.1} parent=1 // pred_fallthru
      _
    // Predicated region
    $region34: #{_lambda_.1} parent=1 // pred_check
      _
    $region35: #{_lambda_.1} parent=1 // pred_check_branch
      %52 = sbr.rel (0) target = $region37
    $region36: #{_lambda_.1} parent=1 // pred_region
      %53 = dma.done [#allocation5], 16384
    $region37: #{_lambda_.1} parent=1 // pred_fallthru
      _
    %v55 = vld [vmem:[%s0] sm:$0xff]
    %v56 = vld [vmem:[%s0 + $0x8] sm:$0xff]
    %v57 = vld [vmem:[%s0 + $0x10] sm:$0xff]
    %v58 = vld [vmem:[%s0 + $0x18] sm:$0xff]
    %v59 = vld [vmem:[#allocation2] sm:$0xff]
    %v60 = vld [vmem:[#allocation2 + $0x8] sm:$0xff]
    %v61 = vld [vmem:[#allocation2 + $0x10] sm:$0xff]
    %v62 = vld [vmem:[#allocation2 + $0x18] sm:$0xff]
    %v63 = vld [vmem:[#allocation2 + $0x20] sm:$0xff]
    %v64 = vld [vmem:[#allocation2 + $0x28] sm:$0xff]
    %v65 = vld [vmem:[#allocation2 + $0x30] sm:$0xff]
    %v66 = vld [vmem:[#allocation2 + $0x38] sm:$0xff]
    %v67 = vld [vmem:[#allocation2 + $0x40] sm:$0xff]
    %v68 = vld [vmem:[#allocation2 + $0x48] sm:$0xff]
    %v69 = vld [vmem:[#allocation2 + $0x50] sm:$0xff]
    %v70 = vld [vmem:[#allocation2 + $0x58] sm:$0xff]
    %v71 = vld [vmem:[#allocation2 + $0x60] sm:$0xff]
    %v72 = vld [vmem:[#allocation2 + $0x68] sm:$0xff]
    %v73 = vld [vmem:[#allocation2 + $0x70] sm:$0xff]
    %v74 = vld [vmem:[#allocation2 + $0x78] sm:$0xff]
    %v75 = vld [vmem:[#allocation2 + $0x80] sm:$0xff]
    %v76 = vld [vmem:[#allocation2 + $0x88] sm:$0xff]
    %v77 = vld [vmem:[#allocation2 + $0x90] sm:$0xff]
    %v78 = vld [vmem:[#allocation2 + $0x98] sm:$0xff]
    %v79 = vld [vmem:[#allocation2 + $0xa0] sm:$0xff]
    %v80 = vld [vmem:[#allocation2 + $0xa8] sm:$0xff]
    %v81 = vld [vmem:[#allocation2 + $0xb0] sm:$0xff]
    %v82 = vld [vmem:[#allocation2 + $0xb8] sm:$0xff]
    %v83 = vld [vmem:[#allocation2 + $0xc0] sm:$0xff]
    %v84 = vld [vmem:[#allocation2 + $0xc8] sm:$0xff]
    %v85 = vld [vmem:[#allocation2 + $0xd0] sm:$0xff]
    %v86 = vld [vmem:[#allocation2 + $0xd8] sm:$0xff]
    %v87 = vld [vmem:[#allocation2 + $0xe0] sm:$0xff]
    %v88 = vld [vmem:[#allocation2 + $0xe8] sm:$0xff]
    %v89 = vld [vmem:[#allocation2 + $0xf0] sm:$0xff]
    %v90 = vld [vmem:[#allocation2 + $0xf8] sm:$0xff]
    %v91 = vld [vmem:[#allocation2 + $0x100] sm:$0xff]
    %v92 = vld [vmem:[#allocation2 + $0x108] sm:$0xff]
    %v93 = vld [vmem:[#allocation2 + $0x110] sm:$0xff]
    %v94 = vld [vmem:[#allocation2 + $0x118] sm:$0xff]
    %v95 = vld [vmem:[#allocation2 + $0x120] sm:$0xff]
    %v96 = vld [vmem:[#allocation2 + $0x128] sm:$0xff]
    %v97 = vld [vmem:[#allocation2 + $0x130] sm:$0xff]
    %v98 = vld [vmem:[#allocation2 + $0x138] sm:$0xff]
    %v99 = vld [vmem:[#allocation2 + $0x140] sm:$0xff]
    %v100 = vld [vmem:[#allocation2 + $0x148] sm:$0xff]
    %v101 = vld [vmem:[#allocation2 + $0x150] sm:$0xff]
    %v102 = vld [vmem:[#allocation2 + $0x158] sm:$0xff]
    %v103 = vld [vmem:[#allocation2 + $0x160] sm:$0xff]
    %v104 = vld [vmem:[#allocation2 + $0x168] sm:$0xff]
    %v105 = vld [vmem:[#allocation2 + $0x170] sm:$0xff]
    %v106 = vld [vmem:[#allocation2 + $0x178] sm:$0xff]
    %v107 = vld [vmem:[#allocation2 + $0x180] sm:$0xff]
    %v108 = vld [vmem:[#allocation2 + $0x188] sm:$0xff]
    %v109 = vld [vmem:[#allocation2 + $0x190] sm:$0xff]
    %v110 = vld [vmem:[#allocation2 + $0x198] sm:$0xff]
    %v111 = vld [vmem:[#allocation2 + $0x1a0] sm:$0xff]
    %v112 = vld [vmem:[#allocation2 + $0x1a8] sm:$0xff]
    %v113 = vld [vmem:[#allocation2 + $0x1b0] sm:$0xff]
    %v114 = vld [vmem:[#allocation2 + $0x1b8] sm:$0xff]
    %v115 = vld [vmem:[#allocation2 + $0x1c0] sm:$0xff]
    %v116 = vld [vmem:[#allocation2 + $0x1c8] sm:$0xff]
    %v117 = vld [vmem:[#allocation2 + $0x1d0] sm:$0xff]
    %v118 = vld [vmem:[#allocation2 + $0x1d8] sm:$0xff]
    %v119 = vld [vmem:[#allocation2 + $0x1e0] sm:$0xff]
    %v120 = vld [vmem:[#allocation2 + $0x1e8] sm:$0xff]
    %v121 = vld [vmem:[#allocation2 + $0x1f0] sm:$0xff]
    %v122 = vld [vmem:[#allocation2 + $0x1f8] sm:$0xff]
    %v123 = vld [vmem:[#allocation2 + $0x200] sm:$0xff]
    %v124 = vld [vmem:[#allocation2 + $0x208] sm:$0xff]
    %v125 = vld [vmem:[#allocation2 + $0x210] sm:$0xff]
    %v126 = vld [vmem:[#allocation2 + $0x218] sm:$0xff]
    %v127 = vld [vmem:[#allocation2 + $0x220] sm:$0xff]
    %v128 = vld [vmem:[#allocation2 + $0x228] sm:$0xff]
    %v129 = vld [vmem:[#allocation2 + $0x230] sm:$0xff]
    %v130 = vld [vmem:[#allocation2 + $0x238] sm:$0xff]
    %v131 = vld [vmem:[#allocation2 + $0x240] sm:$0xff]
    %v132 = vld [vmem:[#allocation2 + $0x248] sm:$0xff]
    %v133 = vld [vmem:[#allocation2 + $0x250] sm:$0xff]
    %v134 = vld [vmem:[#allocation2 + $0x258] sm:$0xff]
    %v135 = vld [vmem:[#allocation2 + $0x260] sm:$0xff]
    %v136 = vld [vmem:[#allocation2 + $0x268] sm:$0xff]
    %v137 = vld [vmem:[#allocation2 + $0x270] sm:$0xff]
    %v138 = vld [vmem:[#allocation2 + $0x278] sm:$0xff]
    %v139 = vld [vmem:[#allocation2 + $0x280] sm:$0xff]
    %v140 = vld [vmem:[#allocation2 + $0x288] sm:$0xff]
    %v141 = vld [vmem:[#allocation2 + $0x290] sm:$0xff]
    %v142 = vld [vmem:[#allocation2 + $0x298] sm:$0xff]
    %v143 = vld [vmem:[#allocation2 + $0x2a0] sm:$0xff]
    %v144 = vld [vmem:[#allocation2 + $0x2a8] sm:$0xff]
    %v145 = vld [vmem:[#allocation2 + $0x2b0] sm:$0xff]
    %v146 = vld [vmem:[#allocation2 + $0x2b8] sm:$0xff]
    %v147 = vld [vmem:[#allocation2 + $0x2c0] sm:$0xff]
    %v148 = vld [vmem:[#allocation2 + $0x2c8] sm:$0xff]
    %v149 = vld [vmem:[#allocation2 + $0x2d0] sm:$0xff]
    %v150 = vld [vmem:[#allocation2 + $0x2d8] sm:$0xff]
    %v151 = vld [vmem:[#allocation2 + $0x2e0] sm:$0xff]
    %v152 = vld [vmem:[#allocation2 + $0x2e8] sm:$0xff]
    %v153 = vld [vmem:[#allocation2 + $0x2f0] sm:$0xff]
    %v154 = vld [vmem:[#allocation2 + $0x2f8] sm:$0xff]
    %v155 = vld [vmem:[#allocation2 + $0x300] sm:$0xff]
    %v156 = vld [vmem:[#allocation2 + $0x308] sm:$0xff]
    %v157 = vld [vmem:[#allocation2 + $0x310] sm:$0xff]
    %v158 = vld [vmem:[#allocation2 + $0x318] sm:$0xff]
    %v159 = vld [vmem:[#allocation2 + $0x320] sm:$0xff]
    %v160 = vld [vmem:[#allocation2 + $0x328] sm:$0xff]
    %v161 = vld [vmem:[#allocation2 + $0x330] sm:$0xff]
    %v162 = vld [vmem:[#allocation2 + $0x338] sm:$0xff]
    %v163 = vld [vmem:[#allocation2 + $0x340] sm:$0xff]
    %v164 = vld [vmem:[#allocation2 + $0x348] sm:$0xff]
    %v165 = vld [vmem:[#allocation2 + $0x350] sm:$0xff]
    %v166 = vld [vmem:[#allocation2 + $0x358] sm:$0xff]
    %v167 = vld [vmem:[#allocation2 + $0x360] sm:$0xff]
    %v168 = vld [vmem:[#allocation2 + $0x368] sm:$0xff]
    %v169 = vld [vmem:[#allocation2 + $0x370] sm:$0xff]
    %v170 = vld [vmem:[#allocation2 + $0x378] sm:$0xff]
    %v171 = vld [vmem:[#allocation2 + $0x380] sm:$0xff]
    %v172 = vld [vmem:[#allocation2 + $0x388] sm:$0xff]
    %v173 = vld [vmem:[#allocation2 + $0x390] sm:$0xff]
    %v174 = vld [vmem:[#allocation2 + $0x398] sm:$0xff]
    %v175 = vld [vmem:[#allocation2 + $0x3a0] sm:$0xff]
    %v176 = vld [vmem:[#allocation2 + $0x3a8] sm:$0xff]
    %v177 = vld [vmem:[#allocation2 + $0x3b0] sm:$0xff]
    %v178 = vld [vmem:[#allocation2 + $0x3b8] sm:$0xff]
    %v179 = vld [vmem:[#allocation2 + $0x3c0] sm:$0xff]
    %v180 = vld [vmem:[#allocation2 + $0x3c8] sm:$0xff]
    %v181 = vld [vmem:[#allocation2 + $0x3d0] sm:$0xff]
    %v182 = vld [vmem:[#allocation2 + $0x3d8] sm:$0xff]
    %v183 = vld [vmem:[#allocation2 + $0x3e0] sm:$0xff]
    %v184 = vld [vmem:[#allocation2 + $0x3e8] sm:$0xff]
    %v185 = vld [vmem:[#allocation2 + $0x3f0] sm:$0xff]
    %v186 = vld [vmem:[#allocation2 + $0x3f8] sm:$0xff]
    %v187 = vld [vmem:[#allocation2 + $0x400] sm:$0xff]
    %v188 = vld [vmem:[#allocation2 + $0x408] sm:$0xff]
    %v189 = vld [vmem:[#allocation2 + $0x410] sm:$0xff]
    %v190 = vld [vmem:[#allocation2 + $0x418] sm:$0xff]
    %v191 = vld [vmem:[#allocation2 + $0x420] sm:$0xff]
    %v192 = vld [vmem:[#allocation2 + $0x428] sm:$0xff]
    %v193 = vld [vmem:[#allocation2 + $0x430] sm:$0xff]
    %v194 = vld [vmem:[#allocation2 + $0x438] sm:$0xff]
    %v195 = vld [vmem:[#allocation2 + $0x440] sm:$0xff]
    %v196 = vld [vmem:[#allocation2 + $0x448] sm:$0xff]
    %v197 = vld [vmem:[#allocation2 + $0x450] sm:$0xff]
    %v198 = vld [vmem:[#allocation2 + $0x458] sm:$0xff]
    %v199 = vld [vmem:[#allocation2 + $0x460] sm:$0xff]
    %v200 = vld [vmem:[#allocation2 + $0x468] sm:$0xff]
    %v201 = vld [vmem:[#allocation2 + $0x470] sm:$0xff]
    %v202 = vld [vmem:[#allocation2 + $0x478] sm:$0xff]
    %v203 = vld [vmem:[#allocation2 + $0x480] sm:$0xff]
    %v204 = vld [vmem:[#allocation2 + $0x488] sm:$0xff]
    %v205 = vld [vmem:[#allocation2 + $0x490] sm:$0xff]
    %v206 = vld [vmem:[#allocation2 + $0x498] sm:$0xff]
    %v207 = vld [vmem:[#allocation2 + $0x4a0] sm:$0xff]
    %v208 = vld [vmem:[#allocation2 + $0x4a8] sm:$0xff]
    %v209 = vld [vmem:[#allocation2 + $0x4b0] sm:$0xff]
    %v210 = vld [vmem:[#allocation2 + $0x4b8] sm:$0xff]
    %v211 = vld [vmem:[#allocation2 + $0x4c0] sm:$0xff]
    %v212 = vld [vmem:[#allocation2 + $0x4c8] sm:$0xff]
    %v213 = vld [vmem:[#allocation2 + $0x4d0] sm:$0xff]
    %v214 = vld [vmem:[#allocation2 + $0x4d8] sm:$0xff]
    %v215 = vld [vmem:[#allocation2 + $0x4e0] sm:$0xff]
    %v216 = vld [vmem:[#allocation2 + $0x4e8] sm:$0xff]
    %v217 = vld [vmem:[#allocation2 + $0x4f0] sm:$0xff]
    %v218 = vld [vmem:[#allocation2 + $0x4f8] sm:$0xff]
    %v219 = vld [vmem:[#allocation2 + $0x500] sm:$0xff]
    %v220 = vld [vmem:[#allocation2 + $0x508] sm:$0xff]
    %v221 = vld [vmem:[#allocation2 + $0x510] sm:$0xff]
    %v222 = vld [vmem:[#allocation2 + $0x518] sm:$0xff]
    %v223 = vld [vmem:[#allocation2 + $0x520] sm:$0xff]
    %v224 = vld [vmem:[#allocation2 + $0x528] sm:$0xff]
    %v225 = vld [vmem:[#allocation2 + $0x530] sm:$0xff]
    %v226 = vld [vmem:[#allocation2 + $0x538] sm:$0xff]
    %v227 = vld [vmem:[#allocation2 + $0x540] sm:$0xff]
    %v228 = vld [vmem:[#allocation2 + $0x548] sm:$0xff]
    %v229 = vld [vmem:[#allocation2 + $0x550] sm:$0xff]
    %v230 = vld [vmem:[#allocation2 + $0x558] sm:$0xff]
    %v231 = vld [vmem:[#allocation2 + $0x560] sm:$0xff]
    %v232 = vld [vmem:[#allocation2 + $0x568] sm:$0xff]
    %v233 = vld [vmem:[#allocation2 + $0x570] sm:$0xff]
    %v234 = vld [vmem:[#allocation2 + $0x578] sm:$0xff]
    %v235 = vld [vmem:[#allocation2 + $0x580] sm:$0xff]
    %v236 = vld [vmem:[#allocation2 + $0x588] sm:$0xff]
    %v237 = vld [vmem:[#allocation2 + $0x590] sm:$0xff]
    %v238 = vld [vmem:[#allocation2 + $0x598] sm:$0xff]
    %v239 = vld [vmem:[#allocation2 + $0x5a0] sm:$0xff]
    %v240 = vld [vmem:[#allocation2 + $0x5a8] sm:$0xff]
    %v241 = vld [vmem:[#allocation2 + $0x5b0] sm:$0xff]
    %v242 = vld [vmem:[#allocation2 + $0x5b8] sm:$0xff]
    %v243 = vld [vmem:[#allocation2 + $0x5c0] sm:$0xff]
    %v244 = vld [vmem:[#allocation2 + $0x5c8] sm:$0xff]
    %v245 = vld [vmem:[#allocation2 + $0x5d0] sm:$0xff]
    %v246 = vld [vmem:[#allocation2 + $0x5d8] sm:$0xff]
    %v247 = vld [vmem:[#allocation2 + $0x5e0] sm:$0xff]
    %v248 = vld [vmem:[#allocation2 + $0x5e8] sm:$0xff]
    %v249 = vld [vmem:[#allocation2 + $0x5f0] sm:$0xff]
    %v250 = vld [vmem:[#allocation2 + $0x5f8] sm:$0xff]
    %v251 = vld [vmem:[#allocation2 + $0x600] sm:$0xff]
    %v252 = vld [vmem:[#allocation2 + $0x608] sm:$0xff]
    %v253 = vld [vmem:[#allocation2 + $0x610] sm:$0xff]
    %v254 = vld [vmem:[#allocation2 + $0x618] sm:$0xff]
    %v255 = vld [vmem:[#allocation2 + $0x620] sm:$0xff]
    %v256 = vld [vmem:[#allocation2 + $0x628] sm:$0xff]
    %v257 = vld [vmem:[#allocation2 + $0x630] sm:$0xff]
    %v258 = vld [vmem:[#allocation2 + $0x638] sm:$0xff]
    %v259 = vld [vmem:[#allocation2 + $0x640] sm:$0xff]
    %v260 = vld [vmem:[#allocation2 + $0x648] sm:$0xff]
    %v261 = vld [vmem:[#allocation2 + $0x650] sm:$0xff]
    %v262 = vld [vmem:[#allocation2 + $0x658] sm:$0xff]
    %v263 = vld [vmem:[#allocation2 + $0x660] sm:$0xff]
    %v264 = vld [vmem:[#allocation2 + $0x668] sm:$0xff]
    %v265 = vld [vmem:[#allocation2 + $0x670] sm:$0xff]
    %v266 = vld [vmem:[#allocation2 + $0x678] sm:$0xff]
    %v267 = vld [vmem:[#allocation2 + $0x680] sm:$0xff]
    %v268 = vld [vmem:[#allocation2 + $0x688] sm:$0xff]
    %v269 = vld [vmem:[#allocation2 + $0x690] sm:$0xff]
    %v270 = vld [vmem:[#allocation2 + $0x698] sm:$0xff]
    %v271 = vld [vmem:[#allocation2 + $0x6a0] sm:$0xff]
    %v272 = vld [vmem:[#allocation2 + $0x6a8] sm:$0xff]
    %v273 = vld [vmem:[#allocation2 + $0x6b0] sm:$0xff]
    %v274 = vld [vmem:[#allocation2 + $0x6b8] sm:$0xff]
    %v275 = vld [vmem:[#allocation2 + $0x6c0] sm:$0xff]
    %v276 = vld [vmem:[#allocation2 + $0x6c8] sm:$0xff]
    %v277 = vld [vmem:[#allocation2 + $0x6d0] sm:$0xff]
    %v278 = vld [vmem:[#allocation2 + $0x6d8] sm:$0xff]
    %v279 = vld [vmem:[#allocation2 + $0x6e0] sm:$0xff]
    %v280 = vld [vmem:[#allocation2 + $0x6e8] sm:$0xff]
    %v281 = vld [vmem:[#allocation2 + $0x6f0] sm:$0xff]
    %v282 = vld [vmem:[#allocation2 + $0x6f8] sm:$0xff]
    %v283 = vld [vmem:[#allocation2 + $0x700] sm:$0xff]
    %v284 = vld [vmem:[#allocation2 + $0x708] sm:$0xff]
    %v285 = vld [vmem:[#allocation2 + $0x710] sm:$0xff]
    %v286 = vld [vmem:[#allocation2 + $0x718] sm:$0xff]
    %v287 = vld [vmem:[#allocation2 + $0x720] sm:$0xff]
    %v288 = vld [vmem:[#allocation2 + $0x728] sm:$0xff]
    %v289 = vld [vmem:[#allocation2 + $0x730] sm:$0xff]
    %v290 = vld [vmem:[#allocation2 + $0x738] sm:$0xff]
    %v291 = vld [vmem:[#allocation2 + $0x740] sm:$0xff]
    %v292 = vld [vmem:[#allocation2 + $0x748] sm:$0xff]
    %v293 = vld [vmem:[#allocation2 + $0x750] sm:$0xff]
    %v294 = vld [vmem:[#allocation2 + $0x758] sm:$0xff]
    %v295 = vld [vmem:[#allocation2 + $0x760] sm:$0xff]
    %v296 = vld [vmem:[#allocation2 + $0x768] sm:$0xff]
    %v297 = vld [vmem:[#allocation2 + $0x770] sm:$0xff]
    %v298 = vld [vmem:[#allocation2 + $0x778] sm:$0xff]
    %v299 = vld [vmem:[#allocation2 + $0x780] sm:$0xff]
    %v300 = vld [vmem:[#allocation2 + $0x788] sm:$0xff]
    %v301 = vld [vmem:[#allocation2 + $0x790] sm:$0xff]
    %v302 = vld [vmem:[#allocation2 + $0x798] sm:$0xff]
    %v303 = vld [vmem:[#allocation2 + $0x7a0] sm:$0xff]
    %v304 = vld [vmem:[#allocation2 + $0x7a8] sm:$0xff]
    %v305 = vld [vmem:[#allocation2 + $0x7b0] sm:$0xff]
    %v306 = vld [vmem:[#allocation2 + $0x7b8] sm:$0xff]
    %v307 = vld [vmem:[#allocation2 + $0x7c0] sm:$0xff]
    %v308 = vld [vmem:[#allocation2 + $0x7c8] sm:$0xff]
    %v309 = vld [vmem:[#allocation2 + $0x7d0] sm:$0xff]
    %v310 = vld [vmem:[#allocation2 + $0x7d8] sm:$0xff]
    %v311 = vld [vmem:[#allocation2 + $0x7e0] sm:$0xff]
    %v312 = vld [vmem:[#allocation2 + $0x7e8] sm:$0xff]
    %v313 = vld [vmem:[#allocation2 + $0x7f0] sm:$0xff]
    %v314 = vld [vmem:[#allocation2 + $0x7f8] sm:$0xff]
    %v315 = vld [vmem:[%s2] sm:$0xf]
    %v317 = vlaneseq
    %v318 = vshrl.u32 %v317, 7
    %v319 = vsub.s32 0, %v318
    %v320 = vrot.slane %v315, %v319
    %v321 = vlaneseq
    %v322 = vshrl.u32 %v321, 7
    %v323 = vsub.s32 1, %v322
    %v324 = vrot.slane %v315, %v323
    %v325 = vlaneseq
    %v326 = vshrl.u32 %v325, 7
    %v327 = vsub.s32 2, %v326
    %v328 = vrot.slane %v315, %v327
    %v329 = vlaneseq
    %v330 = vshrl.u32 %v329, 7
    %v331 = vsub.s32 3, %v330
    %v332 = vrot.slane %v315, %v331
    %v341 = vunpack.c.l.b16 %v55
    %v342 = vunpack.c.h.b16 %v55
    %v343 = vunpack.c.l.b16 %v56
    %v344 = vunpack.c.h.b16 %v56
    %v345 = vunpack.c.l.b16 %v57
    %v346 = vunpack.c.h.b16 %v57
    %v347 = vunpack.c.l.b16 %v58
    %v348 = vunpack.c.h.b16 %v58
    %v349 = vpack.c.b16 %v341, %v341
    %v350 = vpack.c.b16 %v342, %v342
    %v351 = vpack.c.b16 %v343, %v343
    %v352 = vpack.c.b16 %v344, %v344
    %v353 = vpack.c.b16 %v345, %v345
    %v354 = vpack.c.b16 %v346, %v346
    %v355 = vpack.c.b16 %v347, %v347
    %v356 = vpack.c.b16 %v348, %v348
    %v621 = vunpack.c.l.b16 %v59
    %v622 = vunpack.c.h.b16 %v59
    %v623 = vunpack.c.l.b16 %v60
    %v624 = vunpack.c.h.b16 %v60
    %v625 = vunpack.c.l.b16 %v61
    %v626 = vunpack.c.h.b16 %v61
    %v627 = vunpack.c.l.b16 %v62
    %v628 = vunpack.c.h.b16 %v62
    %v629 = vunpack.c.l.b16 %v63
    %v630 = vunpack.c.h.b16 %v63
    %v631 = vunpack.c.l.b16 %v64
    %v632 = vunpack.c.h.b16 %v64
    %v633 = vunpack.c.l.b16 %v65
    %v634 = vunpack.c.h.b16 %v65
    %v635 = vunpack.c.l.b16 %v66
    %v636 = vunpack.c.h.b16 %v66
    %v637 = vunpack.c.l.b16 %v67
    %v638 = vunpack.c.h.b16 %v67
    %v639 = vunpack.c.l.b16 %v68
    %v640 = vunpack.c.h.b16 %v68
    %v641 = vunpack.c.l.b16 %v69
    %v642 = vunpack.c.h.b16 %v69
    %v643 = vunpack.c.l.b16 %v70
    %v644 = vunpack.c.h.b16 %v70
    %v645 = vunpack.c.l.b16 %v71
    %v646 = vunpack.c.h.b16 %v71
    %v647 = vunpack.c.l.b16 %v72
    %v648 = vunpack.c.h.b16 %v72
    %v649 = vunpack.c.l.b16 %v73
    %v650 = vunpack.c.h.b16 %v73
    %v651 = vunpack.c.l.b16 %v74
    %v652 = vunpack.c.h.b16 %v74
    %v653 = vunpack.c.l.b16 %v75
    %v654 = vunpack.c.h.b16 %v75
    %v655 = vunpack.c.l.b16 %v76
    %v656 = vunpack.c.h.b16 %v76
    %v657 = vunpack.c.l.b16 %v77
    %v658 = vunpack.c.h.b16 %v77
    %v659 = vunpack.c.l.b16 %v78
    %v660 = vunpack.c.h.b16 %v78
    %v661 = vunpack.c.l.b16 %v79
    %v662 = vunpack.c.h.b16 %v79
    %v663 = vunpack.c.l.b16 %v80
    %v664 = vunpack.c.h.b16 %v80
    %v665 = vunpack.c.l.b16 %v81
    %v666 = vunpack.c.h.b16 %v81
    %v667 = vunpack.c.l.b16 %v82
    %v668 = vunpack.c.h.b16 %v82
    %v669 = vunpack.c.l.b16 %v83
    %v670 = vunpack.c.h.b16 %v83
    %v671 = vunpack.c.l.b16 %v84
    %v672 = vunpack.c.h.b16 %v84
    %v673 = vunpack.c.l.b16 %v85
    %v674 = vunpack.c.h.b16 %v85
    %v675 = vunpack.c.l.b16 %v86
    %v676 = vunpack.c.h.b16 %v86
    %v677 = vunpack.c.l.b16 %v87
    %v678 = vunpack.c.h.b16 %v87
    %v679 = vunpack.c.l.b16 %v88
    %v680 = vunpack.c.h.b16 %v88
    %v681 = vunpack.c.l.b16 %v89
    %v682 = vunpack.c.h.b16 %v89
    %v683 = vunpack.c.l.b16 %v90
    %v684 = vunpack.c.h.b16 %v90
    %v685 = vunpack.c.l.b16 %v91
    %v686 = vunpack.c.h.b16 %v91
    %v687 = vunpack.c.l.b16 %v92
    %v688 = vunpack.c.h.b16 %v92
    %v689 = vunpack.c.l.b16 %v93
    %v690 = vunpack.c.h.b16 %v93
    %v691 = vunpack.c.l.b16 %v94
    %v692 = vunpack.c.h.b16 %v94
    %v693 = vunpack.c.l.b16 %v95
    %v694 = vunpack.c.h.b16 %v95
    %v695 = vunpack.c.l.b16 %v96
    %v696 = vunpack.c.h.b16 %v96
    %v697 = vunpack.c.l.b16 %v97
    %v698 = vunpack.c.h.b16 %v97
    %v699 = vunpack.c.l.b16 %v98
    %v700 = vunpack.c.h.b16 %v98
    %v701 = vunpack.c.l.b16 %v99
    %v702 = vunpack.c.h.b16 %v99
    %v703 = vunpack.c.l.b16 %v100
    %v704 = vunpack.c.h.b16 %v100
    %v705 = vunpack.c.l.b16 %v101
    %v706 = vunpack.c.h.b16 %v101
    %v707 = vunpack.c.l.b16 %v102
    %v708 = vunpack.c.h.b16 %v102
    %v709 = vunpack.c.l.b16 %v103
    %v710 = vunpack.c.h.b16 %v103
    %v711 = vunpack.c.l.b16 %v104
    %v712 = vunpack.c.h.b16 %v104
    %v713 = vunpack.c.l.b16 %v105
    %v714 = vunpack.c.h.b16 %v105
    %v715 = vunpack.c.l.b16 %v106
    %v716 = vunpack.c.h.b16 %v106
    %v717 = vunpack.c.l.b16 %v107
    %v718 = vunpack.c.h.b16 %v107
    %v719 = vunpack.c.l.b16 %v108
    %v720 = vunpack.c.h.b16 %v108
    %v721 = vunpack.c.l.b16 %v109
    %v722 = vunpack.c.h.b16 %v109
    %v723 = vunpack.c.l.b16 %v110
    %v724 = vunpack.c.h.b16 %v110
    %v725 = vunpack.c.l.b16 %v111
    %v726 = vunpack.c.h.b16 %v111
    %v727 = vunpack.c.l.b16 %v112
    %v728 = vunpack.c.h.b16 %v112
    %v729 = vunpack.c.l.b16 %v113
    %v730 = vunpack.c.h.b16 %v113
    %v731 = vunpack.c.l.b16 %v114
    %v732 = vunpack.c.h.b16 %v114
    %v733 = vunpack.c.l.b16 %v115
    %v734 = vunpack.c.h.b16 %v115
    %v735 = vunpack.c.l.b16 %v116
    %v736 = vunpack.c.h.b16 %v116
    %v737 = vunpack.c.l.b16 %v117
    %v738 = vunpack.c.h.b16 %v117
    %v739 = vunpack.c.l.b16 %v118
    %v740 = vunpack.c.h.b16 %v118
    %v741 = vunpack.c.l.b16 %v119
    %v742 = vunpack.c.h.b16 %v119
    %v743 = vunpack.c.l.b16 %v120
    %v744 = vunpack.c.h.b16 %v120
    %v745 = vunpack.c.l.b16 %v121
    %v746 = vunpack.c.h.b16 %v121
    %v747 = vunpack.c.l.b16 %v122
    %v748 = vunpack.c.h.b16 %v122
    %v749 = vunpack.c.l.b16 %v123
    %v750 = vunpack.c.h.b16 %v123
    %v751 = vunpack.c.l.b16 %v124
    %v752 = vunpack.c.h.b16 %v124
    %v753 = vunpack.c.l.b16 %v125
    %v754 = vunpack.c.h.b16 %v125
    %v755 = vunpack.c.l.b16 %v126
    %v756 = vunpack.c.h.b16 %v126
    %v757 = vunpack.c.l.b16 %v127
    %v758 = vunpack.c.h.b16 %v127
    %v759 = vunpack.c.l.b16 %v128
    %v760 = vunpack.c.h.b16 %v128
    %v761 = vunpack.c.l.b16 %v129
    %v762 = vunpack.c.h.b16 %v129
    %v763 = vunpack.c.l.b16 %v130
    %v764 = vunpack.c.h.b16 %v130
    %v765 = vunpack.c.l.b16 %v131
    %v766 = vunpack.c.h.b16 %v131
    %v767 = vunpack.c.l.b16 %v132
    %v768 = vunpack.c.h.b16 %v132
    %v769 = vunpack.c.l.b16 %v133
    %v770 = vunpack.c.h.b16 %v133
    %v771 = vunpack.c.l.b16 %v134
    %v772 = vunpack.c.h.b16 %v134
    %v773 = vunpack.c.l.b16 %v135
    %v774 = vunpack.c.h.b16 %v135
    %v775 = vunpack.c.l.b16 %v136
    %v776 = vunpack.c.h.b16 %v136
    %v777 = vunpack.c.l.b16 %v137
    %v778 = vunpack.c.h.b16 %v137
    %v779 = vunpack.c.l.b16 %v138
    %v780 = vunpack.c.h.b16 %v138
    %v781 = vunpack.c.l.b16 %v139
    %v782 = vunpack.c.h.b16 %v139
    %v783 = vunpack.c.l.b16 %v140
    %v784 = vunpack.c.h.b16 %v140
    %v785 = vunpack.c.l.b16 %v141
    %v786 = vunpack.c.h.b16 %v141
    %v787 = vunpack.c.l.b16 %v142
    %v788 = vunpack.c.h.b16 %v142
    %v789 = vunpack.c.l.b16 %v143
    %v790 = vunpack.c.h.b16 %v143
    %v791 = vunpack.c.l.b16 %v144
    %v792 = vunpack.c.h.b16 %v144
    %v793 = vunpack.c.l.b16 %v145
    %v794 = vunpack.c.h.b16 %v145
    %v795 = vunpack.c.l.b16 %v146
    %v796 = vunpack.c.h.b16 %v146
    %v797 = vunpack.c.l.b16 %v147
    %v798 = vunpack.c.h.b16 %v147
    %v799 = vunpack.c.l.b16 %v148
    %v800 = vunpack.c.h.b16 %v148
    %v801 = vunpack.c.l.b16 %v149
    %v802 = vunpack.c.h.b16 %v149
    %v803 = vunpack.c.l.b16 %v150
    %v804 = vunpack.c.h.b16 %v150
    %v805 = vunpack.c.l.b16 %v151
    %v806 = vunpack.c.h.b16 %v151
    %v807 = vunpack.c.l.b16 %v152
    %v808 = vunpack.c.h.b16 %v152
    %v809 = vunpack.c.l.b16 %v153
    %v810 = vunpack.c.h.b16 %v153
    %v811 = vunpack.c.l.b16 %v154
    %v812 = vunpack.c.h.b16 %v154
    %v813 = vunpack.c.l.b16 %v155
    %v814 = vunpack.c.h.b16 %v155
    %v815 = vunpack.c.l.b16 %v156
    %v816 = vunpack.c.h.b16 %v156
    %v817 = vunpack.c.l.b16 %v157
    %v818 = vunpack.c.h.b16 %v157
    %v819 = vunpack.c.l.b16 %v158
    %v820 = vunpack.c.h.b16 %v158
    %v821 = vunpack.c.l.b16 %v159
    %v822 = vunpack.c.h.b16 %v159
    %v823 = vunpack.c.l.b16 %v160
    %v824 = vunpack.c.h.b16 %v160
    %v825 = vunpack.c.l.b16 %v161
    %v826 = vunpack.c.h.b16 %v161
    %v827 = vunpack.c.l.b16 %v162
    %v828 = vunpack.c.h.b16 %v162
    %v829 = vunpack.c.l.b16 %v163
    %v830 = vunpack.c.h.b16 %v163
    %v831 = vunpack.c.l.b16 %v164
    %v832 = vunpack.c.h.b16 %v164
    %v833 = vunpack.c.l.b16 %v165
    %v834 = vunpack.c.h.b16 %v165
    %v835 = vunpack.c.l.b16 %v166
    %v836 = vunpack.c.h.b16 %v166
    %v837 = vunpack.c.l.b16 %v167
    %v838 = vunpack.c.h.b16 %v167
    %v839 = vunpack.c.l.b16 %v168
    %v840 = vunpack.c.h.b16 %v168
    %v841 = vunpack.c.l.b16 %v169
    %v842 = vunpack.c.h.b16 %v169
    %v843 = vunpack.c.l.b16 %v170
    %v844 = vunpack.c.h.b16 %v170
    %v845 = vunpack.c.l.b16 %v171
    %v846 = vunpack.c.h.b16 %v171
    %v847 = vunpack.c.l.b16 %v172
    %v848 = vunpack.c.h.b16 %v172
    %v849 = vunpack.c.l.b16 %v173
    %v850 = vunpack.c.h.b16 %v173
    %v851 = vunpack.c.l.b16 %v174
    %v852 = vunpack.c.h.b16 %v174
    %v853 = vunpack.c.l.b16 %v175
    %v854 = vunpack.c.h.b16 %v175
    %v855 = vunpack.c.l.b16 %v176
    %v856 = vunpack.c.h.b16 %v176
    %v857 = vunpack.c.l.b16 %v177
    %v858 = vunpack.c.h.b16 %v177
    %v859 = vunpack.c.l.b16 %v178
    %v860 = vunpack.c.h.b16 %v178
    %v861 = vunpack.c.l.b16 %v179
    %v862 = vunpack.c.h.b16 %v179
    %v863 = vunpack.c.l.b16 %v180
    %v864 = vunpack.c.h.b16 %v180
    %v865 = vunpack.c.l.b16 %v181
    %v866 = vunpack.c.h.b16 %v181
    %v867 = vunpack.c.l.b16 %v182
    %v868 = vunpack.c.h.b16 %v182
    %v869 = vunpack.c.l.b16 %v183
    %v870 = vunpack.c.h.b16 %v183
    %v871 = vunpack.c.l.b16 %v184
    %v872 = vunpack.c.h.b16 %v184
    %v873 = vunpack.c.l.b16 %v185
    %v874 = vunpack.c.h.b16 %v185
    %v875 = vunpack.c.l.b16 %v186
    %v876 = vunpack.c.h.b16 %v186
    %v877 = vunpack.c.l.b16 %v187
    %v878 = vunpack.c.h.b16 %v187
    %v879 = vunpack.c.l.b16 %v188
    %v880 = vunpack.c.h.b16 %v188
    %v881 = vunpack.c.l.b16 %v189
    %v882 = vunpack.c.h.b16 %v189
    %v883 = vunpack.c.l.b16 %v190
    %v884 = vunpack.c.h.b16 %v190
    %v885 = vunpack.c.l.b16 %v191
    %v886 = vunpack.c.h.b16 %v191
    %v887 = vunpack.c.l.b16 %v192
    %v888 = vunpack.c.h.b16 %v192
    %v889 = vunpack.c.l.b16 %v193
    %v890 = vunpack.c.h.b16 %v193
    %v891 = vunpack.c.l.b16 %v194
    %v892 = vunpack.c.h.b16 %v194
    %v893 = vunpack.c.l.b16 %v195
    %v894 = vunpack.c.h.b16 %v195
    %v895 = vunpack.c.l.b16 %v196
    %v896 = vunpack.c.h.b16 %v196
    %v897 = vunpack.c.l.b16 %v197
    %v898 = vunpack.c.h.b16 %v197
    %v899 = vunpack.c.l.b16 %v198
    %v900 = vunpack.c.h.b16 %v198
    %v901 = vunpack.c.l.b16 %v199
    %v902 = vunpack.c.h.b16 %v199
    %v903 = vunpack.c.l.b16 %v200
    %v904 = vunpack.c.h.b16 %v200
    %v905 = vunpack.c.l.b16 %v201
    %v906 = vunpack.c.h.b16 %v201
    %v907 = vunpack.c.l.b16 %v202
    %v908 = vunpack.c.h.b16 %v202
    %v909 = vunpack.c.l.b16 %v203
    %v910 = vunpack.c.h.b16 %v203
    %v911 = vunpack.c.l.b16 %v204
    %v912 = vunpack.c.h.b16 %v204
    %v913 = vunpack.c.l.b16 %v205
    %v914 = vunpack.c.h.b16 %v205
    %v915 = vunpack.c.l.b16 %v206
    %v916 = vunpack.c.h.b16 %v206
    %v917 = vunpack.c.l.b16 %v207
    %v918 = vunpack.c.h.b16 %v207
    %v919 = vunpack.c.l.b16 %v208
    %v920 = vunpack.c.h.b16 %v208
    %v921 = vunpack.c.l.b16 %v209
    %v922 = vunpack.c.h.b16 %v209
    %v923 = vunpack.c.l.b16 %v210
    %v924 = vunpack.c.h.b16 %v210
    %v925 = vunpack.c.l.b16 %v211
    %v926 = vunpack.c.h.b16 %v211
    %v927 = vunpack.c.l.b16 %v212
    %v928 = vunpack.c.h.b16 %v212
    %v929 = vunpack.c.l.b16 %v213
    %v930 = vunpack.c.h.b16 %v213
    %v931 = vunpack.c.l.b16 %v214
    %v932 = vunpack.c.h.b16 %v214
    %v933 = vunpack.c.l.b16 %v215
    %v934 = vunpack.c.h.b16 %v215
    %v935 = vunpack.c.l.b16 %v216
    %v936 = vunpack.c.h.b16 %v216
    %v937 = vunpack.c.l.b16 %v217
    %v938 = vunpack.c.h.b16 %v217
    %v939 = vunpack.c.l.b16 %v218
    %v940 = vunpack.c.h.b16 %v218
    %v941 = vunpack.c.l.b16 %v219
    %v942 = vunpack.c.h.b16 %v219
    %v943 = vunpack.c.l.b16 %v220
    %v944 = vunpack.c.h.b16 %v220
    %v945 = vunpack.c.l.b16 %v221
    %v946 = vunpack.c.h.b16 %v221
    %v947 = vunpack.c.l.b16 %v222
    %v948 = vunpack.c.h.b16 %v222
    %v949 = vunpack.c.l.b16 %v223
    %v950 = vunpack.c.h.b16 %v223
    %v951 = vunpack.c.l.b16 %v224
    %v952 = vunpack.c.h.b16 %v224
    %v953 = vunpack.c.l.b16 %v225
    %v954 = vunpack.c.h.b16 %v225
    %v955 = vunpack.c.l.b16 %v226
    %v956 = vunpack.c.h.b16 %v226
    %v957 = vunpack.c.l.b16 %v227
    %v958 = vunpack.c.h.b16 %v227
    %v959 = vunpack.c.l.b16 %v228
    %v960 = vunpack.c.h.b16 %v228
    %v961 = vunpack.c.l.b16 %v229
    %v962 = vunpack.c.h.b16 %v229
    %v963 = vunpack.c.l.b16 %v230
    %v964 = vunpack.c.h.b16 %v230
    %v965 = vunpack.c.l.b16 %v231
    %v966 = vunpack.c.h.b16 %v231
    %v967 = vunpack.c.l.b16 %v232
    %v968 = vunpack.c.h.b16 %v232
    %v969 = vunpack.c.l.b16 %v233
    %v970 = vunpack.c.h.b16 %v233
    %v971 = vunpack.c.l.b16 %v234
    %v972 = vunpack.c.h.b16 %v234
    %v973 = vunpack.c.l.b16 %v235
    %v974 = vunpack.c.h.b16 %v235
    %v975 = vunpack.c.l.b16 %v236
    %v976 = vunpack.c.h.b16 %v236
    %v977 = vunpack.c.l.b16 %v237
    %v978 = vunpack.c.h.b16 %v237
    %v979 = vunpack.c.l.b16 %v238
    %v980 = vunpack.c.h.b16 %v238
    %v981 = vunpack.c.l.b16 %v239
    %v982 = vunpack.c.h.b16 %v239
    %v983 = vunpack.c.l.b16 %v240
    %v984 = vunpack.c.h.b16 %v240
    %v985 = vunpack.c.l.b16 %v241
    %v986 = vunpack.c.h.b16 %v241
    %v987 = vunpack.c.l.b16 %v242
    %v988 = vunpack.c.h.b16 %v242
    %v989 = vunpack.c.l.b16 %v243
    %v990 = vunpack.c.h.b16 %v243
    %v991 = vunpack.c.l.b16 %v244
    %v992 = vunpack.c.h.b16 %v244
    %v993 = vunpack.c.l.b16 %v245
    %v994 = vunpack.c.h.b16 %v245
    %v995 = vunpack.c.l.b16 %v246
    %v996 = vunpack.c.h.b16 %v246
    %v997 = vunpack.c.l.b16 %v247
    %v998 = vunpack.c.h.b16 %v247
    %v999 = vunpack.c.l.b16 %v248
    %v1000 = vunpack.c.h.b16 %v248
    %v1001 = vunpack.c.l.b16 %v249
    %v1002 = vunpack.c.h.b16 %v249
    %v1003 = vunpack.c.l.b16 %v250
    %v1004 = vunpack.c.h.b16 %v250
    %v1005 = vunpack.c.l.b16 %v251
    %v1006 = vunpack.c.h.b16 %v251
    %v1007 = vunpack.c.l.b16 %v252
    %v1008 = vunpack.c.h.b16 %v252
    %v1009 = vunpack.c.l.b16 %v253
    %v1010 = vunpack.c.h.b16 %v253
    %v1011 = vunpack.c.l.b16 %v254
    %v1012 = vunpack.c.h.b16 %v254
    %v1013 = vunpack.c.l.b16 %v255
    %v1014 = vunpack.c.h.b16 %v255
    %v1015 = vunpack.c.l.b16 %v256
    %v1016 = vunpack.c.h.b16 %v256
    %v1017 = vunpack.c.l.b16 %v257
    %v1018 = vunpack.c.h.b16 %v257
    %v1019 = vunpack.c.l.b16 %v258
    %v1020 = vunpack.c.h.b16 %v258
    %v1021 = vunpack.c.l.b16 %v259
    %v1022 = vunpack.c.h.b16 %v259
    %v1023 = vunpack.c.l.b16 %v260
    %v1024 = vunpack.c.h.b16 %v260
    %v1025 = vunpack.c.l.b16 %v261
    %v1026 = vunpack.c.h.b16 %v261
    %v1027 = vunpack.c.l.b16 %v262
    %v1028 = vunpack.c.h.b16 %v262
    %v1029 = vunpack.c.l.b16 %v263
    %v1030 = vunpack.c.h.b16 %v263
    %v1031 = vunpack.c.l.b16 %v264
    %v1032 = vunpack.c.h.b16 %v264
    %v1033 = vunpack.c.l.b16 %v265
    %v1034 = vunpack.c.h.b16 %v265
    %v1035 = vunpack.c.l.b16 %v266
    %v1036 = vunpack.c.h.b16 %v266
    %v1037 = vunpack.c.l.b16 %v267
    %v1038 = vunpack.c.h.b16 %v267
    %v1039 = vunpack.c.l.b16 %v268
    %v1040 = vunpack.c.h.b16 %v268
    %v1041 = vunpack.c.l.b16 %v269
    %v1042 = vunpack.c.h.b16 %v269
    %v1043 = vunpack.c.l.b16 %v270
    %v1044 = vunpack.c.h.b16 %v270
    %v1045 = vunpack.c.l.b16 %v271
    %v1046 = vunpack.c.h.b16 %v271
    %v1047 = vunpack.c.l.b16 %v272
    %v1048 = vunpack.c.h.b16 %v272
    %v1049 = vunpack.c.l.b16 %v273
    %v1050 = vunpack.c.h.b16 %v273
    %v1051 = vunpack.c.l.b16 %v274
    %v1052 = vunpack.c.h.b16 %v274
    %v1053 = vunpack.c.l.b16 %v275
    %v1054 = vunpack.c.h.b16 %v275
    %v1055 = vunpack.c.l.b16 %v276
    %v1056 = vunpack.c.h.b16 %v276
    %v1057 = vunpack.c.l.b16 %v277
    %v1058 = vunpack.c.h.b16 %v277
    %v1059 = vunpack.c.l.b16 %v278
    %v1060 = vunpack.c.h.b16 %v278
    %v1061 = vunpack.c.l.b16 %v279
    %v1062 = vunpack.c.h.b16 %v279
    %v1063 = vunpack.c.l.b16 %v280
    %v1064 = vunpack.c.h.b16 %v280
    %v1065 = vunpack.c.l.b16 %v281
    %v1066 = vunpack.c.h.b16 %v281
    %v1067 = vunpack.c.l.b16 %v282
    %v1068 = vunpack.c.h.b16 %v282
    %v1069 = vunpack.c.l.b16 %v283
    %v1070 = vunpack.c.h.b16 %v283
    %v1071 = vunpack.c.l.b16 %v284
    %v1072 = vunpack.c.h.b16 %v284
    %v1073 = vunpack.c.l.b16 %v285
    %v1074 = vunpack.c.h.b16 %v285
    %v1075 = vunpack.c.l.b16 %v286
    %v1076 = vunpack.c.h.b16 %v286
    %v1077 = vunpack.c.l.b16 %v287
    %v1078 = vunpack.c.h.b16 %v287
    %v1079 = vunpack.c.l.b16 %v288
    %v1080 = vunpack.c.h.b16 %v288
    %v1081 = vunpack.c.l.b16 %v289
    %v1082 = vunpack.c.h.b16 %v289
    %v1083 = vunpack.c.l.b16 %v290
    %v1084 = vunpack.c.h.b16 %v290
    %v1085 = vunpack.c.l.b16 %v291
    %v1086 = vunpack.c.h.b16 %v291
    %v1087 = vunpack.c.l.b16 %v292
    %v1088 = vunpack.c.h.b16 %v292
    %v1089 = vunpack.c.l.b16 %v293
    %v1090 = vunpack.c.h.b16 %v293
    %v1091 = vunpack.c.l.b16 %v294
    %v1092 = vunpack.c.h.b16 %v294
    %v1093 = vunpack.c.l.b16 %v295
    %v1094 = vunpack.c.h.b16 %v295
    %v1095 = vunpack.c.l.b16 %v296
    %v1096 = vunpack.c.h.b16 %v296
    %v1097 = vunpack.c.l.b16 %v297
    %v1098 = vunpack.c.h.b16 %v297
    %v1099 = vunpack.c.l.b16 %v298
    %v1100 = vunpack.c.h.b16 %v298
    %v1101 = vunpack.c.l.b16 %v299
    %v1102 = vunpack.c.h.b16 %v299
    %v1103 = vunpack.c.l.b16 %v300
    %v1104 = vunpack.c.h.b16 %v300
    %v1105 = vunpack.c.l.b16 %v301
    %v1106 = vunpack.c.h.b16 %v301
    %v1107 = vunpack.c.l.b16 %v302
    %v1108 = vunpack.c.h.b16 %v302
    %v1109 = vunpack.c.l.b16 %v303
    %v1110 = vunpack.c.h.b16 %v303
    %v1111 = vunpack.c.l.b16 %v304
    %v1112 = vunpack.c.h.b16 %v304
    %v1113 = vunpack.c.l.b16 %v305
    %v1114 = vunpack.c.h.b16 %v305
    %v1115 = vunpack.c.l.b16 %v306
    %v1116 = vunpack.c.h.b16 %v306
    %v1117 = vunpack.c.l.b16 %v307
    %v1118 = vunpack.c.h.b16 %v307
    %v1119 = vunpack.c.l.b16 %v308
    %v1120 = vunpack.c.h.b16 %v308
    %v1121 = vunpack.c.l.b16 %v309
    %v1122 = vunpack.c.h.b16 %v309
    %v1123 = vunpack.c.l.b16 %v310
    %v1124 = vunpack.c.h.b16 %v310
    %v1125 = vunpack.c.l.b16 %v311
    %v1126 = vunpack.c.h.b16 %v311
    %v1127 = vunpack.c.l.b16 %v312
    %v1128 = vunpack.c.h.b16 %v312
    %v1129 = vunpack.c.l.b16 %v313
    %v1130 = vunpack.c.h.b16 %v313
    %v1131 = vunpack.c.l.b16 %v314
    %v1132 = vunpack.c.h.b16 %v314
    %v1133 = vpack.c.b16 %v625, %v621
    %v1134 = vpack.c.b16 %v626, %v622
    %v1135 = vpack.c.b16 %v627, %v623
    %v1136 = vpack.c.b16 %v628, %v624
    %v1137 = vpack.c.b16 %v633, %v629
    %v1138 = vpack.c.b16 %v634, %v630
    %v1139 = vpack.c.b16 %v635, %v631
    %v1140 = vpack.c.b16 %v636, %v632
    %v1141 = vpack.c.b16 %v641, %v637
    %v1142 = vpack.c.b16 %v642, %v638
    %v1143 = vpack.c.b16 %v643, %v639
    %v1144 = vpack.c.b16 %v644, %v640
    %v1145 = vpack.c.b16 %v649, %v645
    %v1146 = vpack.c.b16 %v650, %v646
    %v1147 = vpack.c.b16 %v651, %v647
    %v1148 = vpack.c.b16 %v652, %v648
    %v1149 = vpack.c.b16 %v657, %v653
    %v1150 = vpack.c.b16 %v658, %v654
    %v1151 = vpack.c.b16 %v659, %v655
    %v1152 = vpack.c.b16 %v660, %v656
    %v1153 = vpack.c.b16 %v665, %v661
    %v1154 = vpack.c.b16 %v666, %v662
    %v1155 = vpack.c.b16 %v667, %v663
    %v1156 = vpack.c.b16 %v668, %v664
    %v1157 = vpack.c.b16 %v673, %v669
    %v1158 = vpack.c.b16 %v674, %v670
    %v1159 = vpack.c.b16 %v675, %v671
    %v1160 = vpack.c.b16 %v676, %v672
    %v1161 = vpack.c.b16 %v681, %v677
    %v1162 = vpack.c.b16 %v682, %v678
    %v1163 = vpack.c.b16 %v683, %v679
    %v1164 = vpack.c.b16 %v684, %v680
    %v1165 = vpack.c.b16 %v689, %v685
    %v1166 = vpack.c.b16 %v690, %v686
    %v1167 = vpack.c.b16 %v691, %v687
    %v1168 = vpack.c.b16 %v692, %v688
    %v1169 = vpack.c.b16 %v697, %v693
    %v1170 = vpack.c.b16 %v698, %v694
    %v1171 = vpack.c.b16 %v699, %v695
    %v1172 = vpack.c.b16 %v700, %v696
    %v1173 = vpack.c.b16 %v705, %v701
    %v1174 = vpack.c.b16 %v706, %v702
    %v1175 = vpack.c.b16 %v707, %v703
    %v1176 = vpack.c.b16 %v708, %v704
    %v1177 = vpack.c.b16 %v713, %v709
    %v1178 = vpack.c.b16 %v714, %v710
    %v1179 = vpack.c.b16 %v715, %v711
    %v1180 = vpack.c.b16 %v716, %v712
    %v1181 = vpack.c.b16 %v721, %v717
    %v1182 = vpack.c.b16 %v722, %v718
    %v1183 = vpack.c.b16 %v723, %v719
    %v1184 = vpack.c.b16 %v724, %v720
    %v1185 = vpack.c.b16 %v729, %v725
    %v1186 = vpack.c.b16 %v730, %v726
    %v1187 = vpack.c.b16 %v731, %v727
    %v1188 = vpack.c.b16 %v732, %v728
    %v1189 = vpack.c.b16 %v737, %v733
    %v1190 = vpack.c.b16 %v738, %v734
    %v1191 = vpack.c.b16 %v739, %v735
    %v1192 = vpack.c.b16 %v740, %v736
    %v1193 = vpack.c.b16 %v745, %v741
    %v1194 = vpack.c.b16 %v746, %v742
    %v1195 = vpack.c.b16 %v747, %v743
    %v1196 = vpack.c.b16 %v748, %v744
    %v1197 = vpack.c.b16 %v753, %v749
    %v1198 = vpack.c.b16 %v754, %v750
    %v1199 = vpack.c.b16 %v755, %v751
    %v1200 = vpack.c.b16 %v756, %v752
    %v1201 = vpack.c.b16 %v761, %v757
    %v1202 = vpack.c.b16 %v762, %v758
    %v1203 = vpack.c.b16 %v763, %v759
    %v1204 = vpack.c.b16 %v764, %v760
    %v1205 = vpack.c.b16 %v769, %v765
    %v1206 = vpack.c.b16 %v770, %v766
    %v1207 = vpack.c.b16 %v771, %v767
    %v1208 = vpack.c.b16 %v772, %v768
    %v1209 = vpack.c.b16 %v777, %v773
    %v1210 = vpack.c.b16 %v778, %v774
    %v1211 = vpack.c.b16 %v779, %v775
    %v1212 = vpack.c.b16 %v780, %v776
    %v1213 = vpack.c.b16 %v785, %v781
    %v1214 = vpack.c.b16 %v786, %v782
    %v1215 = vpack.c.b16 %v787, %v783
    %v1216 = vpack.c.b16 %v788, %v784
    %v1217 = vpack.c.b16 %v793, %v789
    %v1218 = vpack.c.b16 %v794, %v790
    %v1219 = vpack.c.b16 %v795, %v791
    %v1220 = vpack.c.b16 %v796, %v792
    %v1221 = vpack.c.b16 %v801, %v797
    %v1222 = vpack.c.b16 %v802, %v798
    %v1223 = vpack.c.b16 %v803, %v799
    %v1224 = vpack.c.b16 %v804, %v800
    %v1225 = vpack.c.b16 %v809, %v805
    %v1226 = vpack.c.b16 %v810, %v806
    %v1227 = vpack.c.b16 %v811, %v807
    %v1228 = vpack.c.b16 %v812, %v808
    %v1229 = vpack.c.b16 %v817, %v813
    %v1230 = vpack.c.b16 %v818, %v814
    %v1231 = vpack.c.b16 %v819, %v815
    %v1232 = vpack.c.b16 %v820, %v816
    %v1233 = vpack.c.b16 %v825, %v821
    %v1234 = vpack.c.b16 %v826, %v822
    %v1235 = vpack.c.b16 %v827, %v823
    %v1236 = vpack.c.b16 %v828, %v824
    %v1237 = vpack.c.b16 %v833, %v829
    %v1238 = vpack.c.b16 %v834, %v830
    %v1239 = vpack.c.b16 %v835, %v831
    %v1240 = vpack.c.b16 %v836, %v832
    %v1241 = vpack.c.b16 %v841, %v837
    %v1242 = vpack.c.b16 %v842, %v838
    %v1243 = vpack.c.b16 %v843, %v839
    %v1244 = vpack.c.b16 %v844, %v840
    %v1245 = vpack.c.b16 %v849, %v845
    %v1246 = vpack.c.b16 %v850, %v846
    %v1247 = vpack.c.b16 %v851, %v847
    %v1248 = vpack.c.b16 %v852, %v848
    %v1249 = vpack.c.b16 %v857, %v853
    %v1250 = vpack.c.b16 %v858, %v854
    %v1251 = vpack.c.b16 %v859, %v855
    %v1252 = vpack.c.b16 %v860, %v856
    %v1253 = vpack.c.b16 %v865, %v861
    %v1254 = vpack.c.b16 %v866, %v862
    %v1255 = vpack.c.b16 %v867, %v863
    %v1256 = vpack.c.b16 %v868, %v864
    %v1257 = vpack.c.b16 %v873, %v869
    %v1258 = vpack.c.b16 %v874, %v870
    %v1259 = vpack.c.b16 %v875, %v871
    %v1260 = vpack.c.b16 %v876, %v872
    %v1261 = vpack.c.b16 %v881, %v877
    %v1262 = vpack.c.b16 %v882, %v878
    %v1263 = vpack.c.b16 %v883, %v879
    %v1264 = vpack.c.b16 %v884, %v880
    %v1265 = vpack.c.b16 %v889, %v885
    %v1266 = vpack.c.b16 %v890, %v886
    %v1267 = vpack.c.b16 %v891, %v887
    %v1268 = vpack.c.b16 %v892, %v888
    %v1269 = vpack.c.b16 %v897, %v893
    %v1270 = vpack.c.b16 %v898, %v894
    %v1271 = vpack.c.b16 %v899, %v895
    %v1272 = vpack.c.b16 %v900, %v896
    %v1273 = vpack.c.b16 %v905, %v901
    %v1274 = vpack.c.b16 %v906, %v902
    %v1275 = vpack.c.b16 %v907, %v903
    %v1276 = vpack.c.b16 %v908, %v904
    %v1277 = vpack.c.b16 %v913, %v909
    %v1278 = vpack.c.b16 %v914, %v910
    %v1279 = vpack.c.b16 %v915, %v911
    %v1280 = vpack.c.b16 %v916, %v912
    %v1281 = vpack.c.b16 %v921, %v917
    %v1282 = vpack.c.b16 %v922, %v918
    %v1283 = vpack.c.b16 %v923, %v919
    %v1284 = vpack.c.b16 %v924, %v920
    %v1285 = vpack.c.b16 %v929, %v925
    %v1286 = vpack.c.b16 %v930, %v926
    %v1287 = vpack.c.b16 %v931, %v927
    %v1288 = vpack.c.b16 %v932, %v928
    %v1289 = vpack.c.b16 %v937, %v933
    %v1290 = vpack.c.b16 %v938, %v934
    %v1291 = vpack.c.b16 %v939, %v935
    %v1292 = vpack.c.b16 %v940, %v936
    %v1293 = vpack.c.b16 %v945, %v941
    %v1294 = vpack.c.b16 %v946, %v942
    %v1295 = vpack.c.b16 %v947, %v943
    %v1296 = vpack.c.b16 %v948, %v944
    %v1297 = vpack.c.b16 %v953, %v949
    %v1298 = vpack.c.b16 %v954, %v950
    %v1299 = vpack.c.b16 %v955, %v951
    %v1300 = vpack.c.b16 %v956, %v952
    %v1301 = vpack.c.b16 %v961, %v957
    %v1302 = vpack.c.b16 %v962, %v958
    %v1303 = vpack.c.b16 %v963, %v959
    %v1304 = vpack.c.b16 %v964, %v960
    %v1305 = vpack.c.b16 %v969, %v965
    %v1306 = vpack.c.b16 %v970, %v966
    %v1307 = vpack.c.b16 %v971, %v967
    %v1308 = vpack.c.b16 %v972, %v968
    %v1309 = vpack.c.b16 %v977, %v973
    %v1310 = vpack.c.b16 %v978, %v974
    %v1311 = vpack.c.b16 %v979, %v975
    %v1312 = vpack.c.b16 %v980, %v976
    %v1313 = vpack.c.b16 %v985, %v981
    %v1314 = vpack.c.b16 %v986, %v982
    %v1315 = vpack.c.b16 %v987, %v983
    %v1316 = vpack.c.b16 %v988, %v984
    %v1317 = vpack.c.b16 %v993, %v989
    %v1318 = vpack.c.b16 %v994, %v990
    %v1319 = vpack.c.b16 %v995, %v991
    %v1320 = vpack.c.b16 %v996, %v992
    %v1321 = vpack.c.b16 %v1001, %v997
    %v1322 = vpack.c.b16 %v1002, %v998
    %v1323 = vpack.c.b16 %v1003, %v999
    %v1324 = vpack.c.b16 %v1004, %v1000
    %v1325 = vpack.c.b16 %v1009, %v1005
    %v1326 = vpack.c.b16 %v1010, %v1006
    %v1327 = vpack.c.b16 %v1011, %v1007
    %v1328 = vpack.c.b16 %v1012, %v1008
    %v1329 = vpack.c.b16 %v1017, %v1013
    %v1330 = vpack.c.b16 %v1018, %v1014
    %v1331 = vpack.c.b16 %v1019, %v1015
    %v1332 = vpack.c.b16 %v1020, %v1016
    %v1333 = vpack.c.b16 %v1025, %v1021
    %v1334 = vpack.c.b16 %v1026, %v1022
    %v1335 = vpack.c.b16 %v1027, %v1023
    %v1336 = vpack.c.b16 %v1028, %v1024
    %v1337 = vpack.c.b16 %v1033, %v1029
    %v1338 = vpack.c.b16 %v1034, %v1030
    %v1339 = vpack.c.b16 %v1035, %v1031
    %v1340 = vpack.c.b16 %v1036, %v1032
    %v1341 = vpack.c.b16 %v1041, %v1037
    %v1342 = vpack.c.b16 %v1042, %v1038
    %v1343 = vpack.c.b16 %v1043, %v1039
    %v1344 = vpack.c.b16 %v1044, %v1040
    %v1345 = vpack.c.b16 %v1049, %v1045
    %v1346 = vpack.c.b16 %v1050, %v1046
    %v1347 = vpack.c.b16 %v1051, %v1047
    %v1348 = vpack.c.b16 %v1052, %v1048
    %v1349 = vpack.c.b16 %v1057, %v1053
    %v1350 = vpack.c.b16 %v1058, %v1054
    %v1351 = vpack.c.b16 %v1059, %v1055
    %v1352 = vpack.c.b16 %v1060, %v1056
    %v1353 = vpack.c.b16 %v1065, %v1061
    %v1354 = vpack.c.b16 %v1066, %v1062
    %v1355 = vpack.c.b16 %v1067, %v1063
    %v1356 = vpack.c.b16 %v1068, %v1064
    %v1357 = vpack.c.b16 %v1073, %v1069
    %v1358 = vpack.c.b16 %v1074, %v1070
    %v1359 = vpack.c.b16 %v1075, %v1071
    %v1360 = vpack.c.b16 %v1076, %v1072
    %v1361 = vpack.c.b16 %v1081, %v1077
    %v1362 = vpack.c.b16 %v1082, %v1078
    %v1363 = vpack.c.b16 %v1083, %v1079
    %v1364 = vpack.c.b16 %v1084, %v1080
    %v1365 = vpack.c.b16 %v1089, %v1085
    %v1366 = vpack.c.b16 %v1090, %v1086
    %v1367 = vpack.c.b16 %v1091, %v1087
    %v1368 = vpack.c.b16 %v1092, %v1088
    %v1369 = vpack.c.b16 %v1097, %v1093
    %v1370 = vpack.c.b16 %v1098, %v1094
    %v1371 = vpack.c.b16 %v1099, %v1095
    %v1372 = vpack.c.b16 %v1100, %v1096
    %v1373 = vpack.c.b16 %v1105, %v1101
    %v1374 = vpack.c.b16 %v1106, %v1102
    %v1375 = vpack.c.b16 %v1107, %v1103
    %v1376 = vpack.c.b16 %v1108, %v1104
    %v1377 = vpack.c.b16 %v1113, %v1109
    %v1378 = vpack.c.b16 %v1114, %v1110
    %v1379 = vpack.c.b16 %v1115, %v1111
    %v1380 = vpack.c.b16 %v1116, %v1112
    %v1381 = vpack.c.b16 %v1121, %v1117
    %v1382 = vpack.c.b16 %v1122, %v1118
    %v1383 = vpack.c.b16 %v1123, %v1119
    %v1384 = vpack.c.b16 %v1124, %v1120
    %v1385 = vpack.c.b16 %v1129, %v1125
    %v1386 = vpack.c.b16 %v1130, %v1126
    %v1387 = vpack.c.b16 %v1131, %v1127
    %v1388 = vpack.c.b16 %v1132, %v1128
    %1645 = vmatprep.subr.bf16.mxu0 %v1134
    %1646 = vmatpush1.bf16.msra.mxu0 %v1133
    %1647 = vmatprep.subr.bf16.mxu0 %v1138
    %1648 = vmatpush1.bf16.msra.mxu0 %v1137
    %1649 = vmatprep.subr.bf16.mxu0 %v1142
    %1650 = vmatpush1.bf16.msra.mxu0 %v1141
    %1651 = vmatprep.subr.bf16.mxu0 %v1146
    %1652 = vmatpush1.bf16.msra.mxu0 %v1145
    %1653 = vmatprep.subr.bf16.mxu0 %v1150
    %1654 = vmatpush1.bf16.msra.mxu0 %v1149
    %1655 = vmatprep.subr.bf16.mxu0 %v1154
    %1656 = vmatpush1.bf16.msra.mxu0 %v1153
    %1657 = vmatprep.subr.bf16.mxu0 %v1158
    %1658 = vmatpush1.bf16.msra.mxu0 %v1157
    %1659 = vmatprep.subr.bf16.mxu0 %v1162
    %1660 = vmatpush1.bf16.msra.mxu0 %v1161
    %1661 = vmatprep.subr.bf16.mxu0 %v1166
    %1662 = vmatpush1.bf16.msra.mxu0 %v1165
    %1663 = vmatprep.subr.bf16.mxu0 %v1170
    %1664 = vmatpush1.bf16.msra.mxu0 %v1169
    %1665 = vmatprep.subr.bf16.mxu0 %v1174
    %1666 = vmatpush1.bf16.msra.mxu0 %v1173
    %1667 = vmatprep.subr.bf16.mxu0 %v1178
    %1668 = vmatpush1.bf16.msra.mxu0 %v1177
    %1669 = vmatprep.subr.bf16.mxu0 %v1182
    %1670 = vmatpush1.bf16.msra.mxu0 %v1181
    %1671 = vmatprep.subr.bf16.mxu0 %v1186
    %1672 = vmatpush1.bf16.msra.mxu0 %v1185
    %1673 = vmatprep.subr.bf16.mxu0 %v1190
    %1674 = vmatpush1.bf16.msra.mxu0 %v1189
    %1675 = vmatprep.subr.bf16.mxu0 %v1194
    %1676 = vmatpush1.bf16.msra.mxu0 %v1193
    %1677 = vmatprep.mubr.bf16.mxu0 %v350
    %1678 = vmatmul.mubr.bf16.gmra.mrb[0].mxu0 %v349
    %v1679 = vpop.f32.mrb[0].mxu0
    %v1680 = vadd.f32 %v320, %v1679
    %v1681 = vpop.f32.mrb[0].mxu0
    %v1682 = vadd.f32 %v324, %v1681
    %v1683 = vpop.f32.mrb[0].mxu0
    %v1684 = vpop.f32.mrb[0].mxu0
    %1685 = vdwg.mxu0
    %1686 = vmatprep.subr.bf16.mxu0 %v1198
    %1687 = vmatpush1.bf16.msra.mxu0 %v1197
    %1688 = vmatprep.subr.bf16.mxu0 %v1202
    %1689 = vmatpush1.bf16.msra.mxu0 %v1201
    %1690 = vmatprep.subr.bf16.mxu0 %v1206
    %1691 = vmatpush1.bf16.msra.mxu0 %v1205
    %1692 = vmatprep.subr.bf16.mxu0 %v1210
    %1693 = vmatpush1.bf16.msra.mxu0 %v1209
    %1694 = vmatprep.subr.bf16.mxu0 %v1214
    %1695 = vmatpush1.bf16.msra.mxu0 %v1213
    %1696 = vmatprep.subr.bf16.mxu0 %v1218
    %1697 = vmatpush1.bf16.msra.mxu0 %v1217
    %1698 = vmatprep.subr.bf16.mxu0 %v1222
    %1699 = vmatpush1.bf16.msra.mxu0 %v1221
    %1700 = vmatprep.subr.bf16.mxu0 %v1226
    %1701 = vmatpush1.bf16.msra.mxu0 %v1225
    %1702 = vmatprep.subr.bf16.mxu0 %v1230
    %1703 = vmatpush1.bf16.msra.mxu0 %v1229
    %1704 = vmatprep.subr.bf16.mxu0 %v1234
    %1705 = vmatpush1.bf16.msra.mxu0 %v1233
    %1706 = vmatprep.subr.bf16.mxu0 %v1238
    %1707 = vmatpush1.bf16.msra.mxu0 %v1237
    %1708 = vmatprep.subr.bf16.mxu0 %v1242
    %1709 = vmatpush1.bf16.msra.mxu0 %v1241
    %1710 = vmatprep.subr.bf16.mxu0 %v1246
    %1711 = vmatpush1.bf16.msra.mxu0 %v1245
    %1712 = vmatprep.subr.bf16.mxu0 %v1250
    %1713 = vmatpush1.bf16.msra.mxu0 %v1249
    %1714 = vmatprep.subr.bf16.mxu0 %v1254
    %1715 = vmatpush1.bf16.msra.mxu0 %v1253
    %1716 = vmatprep.subr.bf16.mxu0 %v1258
    %1717 = vmatpush1.bf16.msra.mxu0 %v1257
    %1718 = vmatprep.mubr.bf16.mxu0 %v352
    %1719 = vmatmul.mubr.bf16.gmra.mrb[0].mxu0 %v351
    %v1720 = vpop.f32.mrb[0].mxu0
    %v1721 = vadd.f32 %v1680, %v1720
    %v1722 = vpop.f32.mrb[0].mxu0
    %v1723 = vadd.f32 %v1682, %v1722
    %v1724 = vpop.f32.mrb[0].mxu0
    %v1725 = vpop.f32.mrb[0].mxu0
    %1726 = vdwg.mxu0
    %1727 = vmatprep.subr.bf16.mxu0 %v1262
    %1728 = vmatpush1.bf16.msra.mxu0 %v1261
    %1729 = vmatprep.subr.bf16.mxu0 %v1266
    %1730 = vmatpush1.bf16.msra.mxu0 %v1265
    %1731 = vmatprep.subr.bf16.mxu0 %v1270
    %1732 = vmatpush1.bf16.msra.mxu0 %v1269
    %1733 = vmatprep.subr.bf16.mxu0 %v1274
    %1734 = vmatpush1.bf16.msra.mxu0 %v1273
    %1735 = vmatprep.subr.bf16.mxu0 %v1278
    %1736 = vmatpush1.bf16.msra.mxu0 %v1277
    %1737 = vmatprep.subr.bf16.mxu0 %v1282
    %1738 = vmatpush1.bf16.msra.mxu0 %v1281
    %1739 = vmatprep.subr.bf16.mxu0 %v1286
    %1740 = vmatpush1.bf16.msra.mxu0 %v1285
    %1741 = vmatprep.subr.bf16.mxu0 %v1290
    %1742 = vmatpush1.bf16.msra.mxu0 %v1289
    %1743 = vmatprep.subr.bf16.mxu0 %v1294
    %1744 = vmatpush1.bf16.msra.mxu0 %v1293
    %1745 = vmatprep.subr.bf16.mxu0 %v1298
    %1746 = vmatpush1.bf16.msra.mxu0 %v1297
    %1747 = vmatprep.subr.bf16.mxu0 %v1302
    %1748 = vmatpush1.bf16.msra.mxu0 %v1301
    %1749 = vmatprep.subr.bf16.mxu0 %v1306
    %1750 = vmatpush1.bf16.msra.mxu0 %v1305
    %1751 = vmatprep.subr.bf16.mxu0 %v1310
    %1752 = vmatpush1.bf16.msra.mxu0 %v1309
    %1753 = vmatprep.subr.bf16.mxu0 %v1314
    %1754 = vmatpush1.bf16.msra.mxu0 %v1313
    %1755 = vmatprep.subr.bf16.mxu0 %v1318
    %1756 = vmatpush1.bf16.msra.mxu0 %v1317
    %1757 = vmatprep.subr.bf16.mxu0 %v1322
    %1758 = vmatpush1.bf16.msra.mxu0 %v1321
    %1759 = vmatprep.mubr.bf16.mxu0 %v354
    %1760 = vmatmul.mubr.bf16.gmra.mrb[0].mxu0 %v353
    %v1761 = vpop.f32.mrb[0].mxu0
    %v1762 = vadd.f32 %v1721, %v1761
    %v1763 = vpop.f32.mrb[0].mxu0
    %v1764 = vadd.f32 %v1723, %v1763
    %v1765 = vpop.f32.mrb[0].mxu0
    %v1766 = vpop.f32.mrb[0].mxu0
    %1767 = vdwg.mxu0
    %1768 = vmatprep.subr.bf16.mxu0 %v1326
    %1769 = vmatpush1.bf16.msra.mxu0 %v1325
    %1770 = vmatprep.subr.bf16.mxu0 %v1330
    %1771 = vmatpush1.bf16.msra.mxu0 %v1329
    %1772 = vmatprep.subr.bf16.mxu0 %v1334
    %1773 = vmatpush1.bf16.msra.mxu0 %v1333
    %1774 = vmatprep.subr.bf16.mxu0 %v1338
    %1775 = vmatpush1.bf16.msra.mxu0 %v1337
    %1776 = vmatprep.subr.bf16.mxu0 %v1342
    %1777 = vmatpush1.bf16.msra.mxu0 %v1341
    %1778 = vmatprep.subr.bf16.mxu0 %v1346
    %1779 = vmatpush1.bf16.msra.mxu0 %v1345
    %1780 = vmatprep.subr.bf16.mxu0 %v1350
    %1781 = vmatpush1.bf16.msra.mxu0 %v1349
    %1782 = vmatprep.subr.bf16.mxu0 %v1354
    %1783 = vmatpush1.bf16.msra.mxu0 %v1353
    %1784 = vmatprep.subr.bf16.mxu0 %v1358
    %1785 = vmatpush1.bf16.msra.mxu0 %v1357
    %1786 = vmatprep.subr.bf16.mxu0 %v1362
    %1787 = vmatpush1.bf16.msra.mxu0 %v1361
    %1788 = vmatprep.subr.bf16.mxu0 %v1366
    %1789 = vmatpush1.bf16.msra.mxu0 %v1365
    %1790 = vmatprep.subr.bf16.mxu0 %v1370
    %1791 = vmatpush1.bf16.msra.mxu0 %v1369
    %1792 = vmatprep.subr.bf16.mxu0 %v1374
    %1793 = vmatpush1.bf16.msra.mxu0 %v1373
    %1794 = vmatprep.subr.bf16.mxu0 %v1378
    %1795 = vmatpush1.bf16.msra.mxu0 %v1377
    %1796 = vmatprep.subr.bf16.mxu0 %v1382
    %1797 = vmatpush1.bf16.msra.mxu0 %v1381
    %1798 = vmatprep.subr.bf16.mxu0 %v1386
    %1799 = vmatpush1.bf16.msra.mxu0 %v1385
    %1800 = vmatprep.mubr.bf16.mxu0 %v356
    %1801 = vmatmul.mubr.bf16.gmra.mrb[0].mxu0 %v355
    %v1802 = vpop.f32.mrb[0].mxu0
    %v1803 = vadd.f32 %v1762, %v1802
    %v1804 = vpop.f32.mrb[0].mxu0
    %v1805 = vadd.f32 %v1764, %v1804
    %v1806 = vpop.f32.mrb[0].mxu0
    %v1807 = vpop.f32.mrb[0].mxu0
    %1808 = vdwg.mxu0
    %1809 = vmatprep.subr.bf16.mxu0 %v1136
    %1810 = vmatpush1.bf16.msra.mxu0 %v1135
    %1811 = vmatprep.subr.bf16.mxu0 %v1140
    %1812 = vmatpush1.bf16.msra.mxu0 %v1139
    %1813 = vmatprep.subr.bf16.mxu0 %v1144
    %1814 = vmatpush1.bf16.msra.mxu0 %v1143
    %1815 = vmatprep.subr.bf16.mxu0 %v1148
    %1816 = vmatpush1.bf16.msra.mxu0 %v1147
    %1817 = vmatprep.subr.bf16.mxu0 %v1152
    %1818 = vmatpush1.bf16.msra.mxu0 %v1151
    %1819 = vmatprep.subr.bf16.mxu0 %v1156
    %1820 = vmatpush1.bf16.msra.mxu0 %v1155
    %1821 = vmatprep.subr.bf16.mxu0 %v1160
    %1822 = vmatpush1.bf16.msra.mxu0 %v1159
    %1823 = vmatprep.subr.bf16.mxu0 %v1164
    %1824 = vmatpush1.bf16.msra.mxu0 %v1163
    %1825 = vmatprep.subr.bf16.mxu0 %v1168
    %1826 = vmatpush1.bf16.msra.mxu0 %v1167
    %1827 = vmatprep.subr.bf16.mxu0 %v1172
    %1828 = vmatpush1.bf16.msra.mxu0 %v1171
    %1829 = vmatprep.subr.bf16.mxu0 %v1176
    %1830 = vmatpush1.bf16.msra.mxu0 %v1175
    %1831 = vmatprep.subr.bf16.mxu0 %v1180
    %1832 = vmatpush1.bf16.msra.mxu0 %v1179
    %1833 = vmatprep.subr.bf16.mxu0 %v1184
    %1834 = vmatpush1.bf16.msra.mxu0 %v1183
    %1835 = vmatprep.subr.bf16.mxu0 %v1188
    %1836 = vmatpush1.bf16.msra.mxu0 %v1187
    %1837 = vmatprep.subr.bf16.mxu0 %v1192
    %1838 = vmatpush1.bf16.msra.mxu0 %v1191
    %1839 = vmatprep.subr.bf16.mxu0 %v1196
    %1840 = vmatpush1.bf16.msra.mxu0 %v1195
    %1841 = vmatprep.mubr.bf16.mxu0 %v350
    %1842 = vmatmul.mubr.bf16.gmra.mrb[0].mxu0 %v349
    %v1843 = vpop.f32.mrb[0].mxu0
    %v1844 = vadd.f32 %v328, %v1843
    %v1845 = vpop.f32.mrb[0].mxu0
    %v1846 = vadd.f32 %v332, %v1845
    %v1847 = vpop.f32.mrb[0].mxu0
    %v1848 = vpop.f32.mrb[0].mxu0
    %1849 = vdwg.mxu0
    %1850 = vmatprep.subr.bf16.mxu0 %v1200
    %1851 = vmatpush1.bf16.msra.mxu0 %v1199
    %1852 = vmatprep.subr.bf16.mxu0 %v1204
    %1853 = vmatpush1.bf16.msra.mxu0 %v1203
    %1854 = vmatprep.subr.bf16.mxu0 %v1208
    %1855 = vmatpush1.bf16.msra.mxu0 %v1207
    %1856 = vmatprep.subr.bf16.mxu0 %v1212
    %1857 = vmatpush1.bf16.msra.mxu0 %v1211
    %1858 = vmatprep.subr.bf16.mxu0 %v1216
    %1859 = vmatpush1.bf16.msra.mxu0 %v1215
    %1860 = vmatprep.subr.bf16.mxu0 %v1220
    %1861 = vmatpush1.bf16.msra.mxu0 %v1219
    %1862 = vmatprep.subr.bf16.mxu0 %v1224
    %1863 = vmatpush1.bf16.msra.mxu0 %v1223
    %1864 = vmatprep.subr.bf16.mxu0 %v1228
    %1865 = vmatpush1.bf16.msra.mxu0 %v1227
    %1866 = vmatprep.subr.bf16.mxu0 %v1232
    %1867 = vmatpush1.bf16.msra.mxu0 %v1231
    %1868 = vmatprep.subr.bf16.mxu0 %v1236
    %1869 = vmatpush1.bf16.msra.mxu0 %v1235
    %1870 = vmatprep.subr.bf16.mxu0 %v1240
    %1871 = vmatpush1.bf16.msra.mxu0 %v1239
    %1872 = vmatprep.subr.bf16.mxu0 %v1244
    %1873 = vmatpush1.bf16.msra.mxu0 %v1243
    %1874 = vmatprep.subr.bf16.mxu0 %v1248
    %1875 = vmatpush1.bf16.msra.mxu0 %v1247
    %1876 = vmatprep.subr.bf16.mxu0 %v1252
    %1877 = vmatpush1.bf16.msra.mxu0 %v1251
    %1878 = vmatprep.subr.bf16.mxu0 %v1256
    %1879 = vmatpush1.bf16.msra.mxu0 %v1255
    %1880 = vmatprep.subr.bf16.mxu0 %v1260
    %1881 = vmatpush1.bf16.msra.mxu0 %v1259
    %1882 = vmatprep.mubr.bf16.mxu0 %v352
    %1883 = vmatmul.mubr.bf16.gmra.mrb[0].mxu0 %v351
    %v1884 = vpop.f32.mrb[0].mxu0
    %v1885 = vadd.f32 %v1844, %v1884
    %v1886 = vpop.f32.mrb[0].mxu0
    %v1887 = vadd.f32 %v1846, %v1886
    %v1888 = vpop.f32.mrb[0].mxu0
    %v1889 = vpop.f32.mrb[0].mxu0
    %1890 = vdwg.mxu0
    %1891 = vmatprep.subr.bf16.mxu0 %v1264
    %1892 = vmatpush1.bf16.msra.mxu0 %v1263
    %1893 = vmatprep.subr.bf16.mxu0 %v1268
    %1894 = vmatpush1.bf16.msra.mxu0 %v1267
    %1895 = vmatprep.subr.bf16.mxu0 %v1272
    %1896 = vmatpush1.bf16.msra.mxu0 %v1271
    %1897 = vmatprep.subr.bf16.mxu0 %v1276
    %1898 = vmatpush1.bf16.msra.mxu0 %v1275
    %1899 = vmatprep.subr.bf16.mxu0 %v1280
    %1900 = vmatpush1.bf16.msra.mxu0 %v1279
    %1901 = vmatprep.subr.bf16.mxu0 %v1284
    %1902 = vmatpush1.bf16.msra.mxu0 %v1283
    %1903 = vmatprep.subr.bf16.mxu0 %v1288
    %1904 = vmatpush1.bf16.msra.mxu0 %v1287
    %1905 = vmatprep.subr.bf16.mxu0 %v1292
    %1906 = vmatpush1.bf16.msra.mxu0 %v1291
    %1907 = vmatprep.subr.bf16.mxu0 %v1296
    %1908 = vmatpush1.bf16.msra.mxu0 %v1295
    %1909 = vmatprep.subr.bf16.mxu0 %v1300
    %1910 = vmatpush1.bf16.msra.mxu0 %v1299
    %1911 = vmatprep.subr.bf16.mxu0 %v1304
    %1912 = vmatpush1.bf16.msra.mxu0 %v1303
    %1913 = vmatprep.subr.bf16.mxu0 %v1308
    %1914 = vmatpush1.bf16.msra.mxu0 %v1307
    %1915 = vmatprep.subr.bf16.mxu0 %v1312
    %1916 = vmatpush1.bf16.msra.mxu0 %v1311
    %1917 = vmatprep.subr.bf16.mxu0 %v1316
    %1918 = vmatpush1.bf16.msra.mxu0 %v1315
    %1919 = vmatprep.subr.bf16.mxu0 %v1320
    %1920 = vmatpush1.bf16.msra.mxu0 %v1319
    %1921 = vmatprep.subr.bf16.mxu0 %v1324
    %1922 = vmatpush1.bf16.msra.mxu0 %v1323
    %1923 = vmatprep.mubr.bf16.mxu0 %v354
    %1924 = vmatmul.mubr.bf16.gmra.mrb[0].mxu0 %v353
    %v1925 = vpop.f32.mrb[0].mxu0
    %v1926 = vadd.f32 %v1885, %v1925
    %v1927 = vpop.f32.mrb[0].mxu0
    %v1928 = vadd.f32 %v1887, %v1927
    %v1929 = vpop.f32.mrb[0].mxu0
    %v1930 = vpop.f32.mrb[0].mxu0
    %1931 = vdwg.mxu0
    %1932 = vmatprep.subr.bf16.mxu0 %v1328
    %1933 = vmatpush1.bf16.msra.mxu0 %v1327
    %1934 = vmatprep.subr.bf16.mxu0 %v1332
    %1935 = vmatpush1.bf16.msra.mxu0 %v1331
    %1936 = vmatprep.subr.bf16.mxu0 %v1336
    %1937 = vmatpush1.bf16.msra.mxu0 %v1335
    %1938 = vmatprep.subr.bf16.mxu0 %v1340
    %1939 = vmatpush1.bf16.msra.mxu0 %v1339
    %1940 = vmatprep.subr.bf16.mxu0 %v1344
    %1941 = vmatpush1.bf16.msra.mxu0 %v1343
    %1942 = vmatprep.subr.bf16.mxu0 %v1348
    %1943 = vmatpush1.bf16.msra.mxu0 %v1347
    %1944 = vmatprep.subr.bf16.mxu0 %v1352
    %1945 = vmatpush1.bf16.msra.mxu0 %v1351
    %1946 = vmatprep.subr.bf16.mxu0 %v1356
    %1947 = vmatpush1.bf16.msra.mxu0 %v1355
    %1948 = vmatprep.subr.bf16.mxu0 %v1360
    %1949 = vmatpush1.bf16.msra.mxu0 %v1359
    %1950 = vmatprep.subr.bf16.mxu0 %v1364
    %1951 = vmatpush1.bf16.msra.mxu0 %v1363
    %1952 = vmatprep.subr.bf16.mxu0 %v1368
    %1953 = vmatpush1.bf16.msra.mxu0 %v1367
    %1954 = vmatprep.subr.bf16.mxu0 %v1372
    %1955 = vmatpush1.bf16.msra.mxu0 %v1371
    %1956 = vmatprep.subr.bf16.mxu0 %v1376
    %1957 = vmatpush1.bf16.msra.mxu0 %v1375
    %1958 = vmatprep.subr.bf16.mxu0 %v1380
    %1959 = vmatpush1.bf16.msra.mxu0 %v1379
    %1960 = vmatprep.subr.bf16.mxu0 %v1384
    %1961 = vmatpush1.bf16.msra.mxu0 %v1383
    %1962 = vmatprep.subr.bf16.mxu0 %v1388
    %1963 = vmatpush1.bf16.msra.mxu0 %v1387
    %1964 = vmatprep.mubr.bf16.mxu0 %v356
    %1965 = vmatmul.mubr.bf16.gmra.mrb[0].mxu0 %v355
    %v1966 = vpop.f32.mrb[0].mxu0
    %v1967 = vadd.f32 %v1926, %v1966
    %v1968 = vpop.f32.mrb[0].mxu0
    %v1969 = vadd.f32 %v1928, %v1968
    %v1970 = vpop.f32.mrb[0].mxu0
    %v1971 = vpop.f32.mrb[0].mxu0
    %1972 = vdwg.mxu0
    %v1973 = vmax.f32 %v1803, 0.0
    %v1974 = vmax.f32 %v1805, 0.0
    %v1975 = vmax.f32 %v1967, 0.0
    %v1976 = vmax.f32 %v1969, 0.0
    %v1977 = vpack.c.bf16 %v1973, %v1973
    %v1978 = vpack.c.bf16 %v1974, %v1974
    %v1979 = vpack.c.bf16 %v1975, %v1975
    %v1980 = vpack.c.bf16 %v1976, %v1976
    %v1981 = vld [vmem:[#allocation4] sm:$0xff]
    %v1982 = vld [vmem:[#allocation4 + $0x8] sm:$0xff]
    %v1983 = vld [vmem:[#allocation4 + $0x10] sm:$0xff]
    %v1984 = vld [vmem:[#allocation4 + $0x18] sm:$0xff]
    %v1985 = vld [vmem:[#allocation4 + $0x20] sm:$0xff]
    %v1986 = vld [vmem:[#allocation4 + $0x28] sm:$0xff]
    %v1987 = vld [vmem:[#allocation4 + $0x30] sm:$0xff]
    %v1988 = vld [vmem:[#allocation4 + $0x38] sm:$0xff]
    %v1989 = vld [vmem:[#allocation4 + $0x40] sm:$0xff]
    %v1990 = vld [vmem:[#allocation4 + $0x48] sm:$0xff]
    %v1991 = vld [vmem:[#allocation4 + $0x50] sm:$0xff]
    %v1992 = vld [vmem:[#allocation4 + $0x58] sm:$0xff]
    %v1993 = vld [vmem:[#allocation4 + $0x60] sm:$0xff]
    %v1994 = vld [vmem:[#allocation4 + $0x68] sm:$0xff]
    %v1995 = vld [vmem:[#allocation4 + $0x70] sm:$0xff]
    %v1996 = vld [vmem:[#allocation4 + $0x78] sm:$0xff]
    %v1997 = vld [vmem:[#allocation4 + $0x80] sm:$0xff]
    %v1998 = vld [vmem:[#allocation4 + $0x88] sm:$0xff]
    %v1999 = vld [vmem:[#allocation4 + $0x90] sm:$0xff]
    %v2000 = vld [vmem:[#allocation4 + $0x98] sm:$0xff]
    %v2001 = vld [vmem:[#allocation4 + $0xa0] sm:$0xff]
    %v2002 = vld [vmem:[#allocation4 + $0xa8] sm:$0xff]
    %v2003 = vld [vmem:[#allocation4 + $0xb0] sm:$0xff]
    %v2004 = vld [vmem:[#allocation4 + $0xb8] sm:$0xff]
    %v2005 = vld [vmem:[#allocation4 + $0xc0] sm:$0xff]
    %v2006 = vld [vmem:[#allocation4 + $0xc8] sm:$0xff]
    %v2007 = vld [vmem:[#allocation4 + $0xd0] sm:$0xff]
    %v2008 = vld [vmem:[#allocation4 + $0xd8] sm:$0xff]
    %v2009 = vld [vmem:[#allocation4 + $0xe0] sm:$0xff]
    %v2010 = vld [vmem:[#allocation4 + $0xe8] sm:$0xff]
    %v2011 = vld [vmem:[#allocation4 + $0xf0] sm:$0xff]
    %v2012 = vld [vmem:[#allocation4 + $0xf8] sm:$0xff]
    %v2013 = vld [vmem:[#allocation4 + $0x100] sm:$0xff]
    %v2014 = vld [vmem:[#allocation4 + $0x108] sm:$0xff]
    %v2015 = vld [vmem:[#allocation4 + $0x110] sm:$0xff]
    %v2016 = vld [vmem:[#allocation4 + $0x118] sm:$0xff]
    %v2017 = vld [vmem:[#allocation4 + $0x120] sm:$0xff]
    %v2018 = vld [vmem:[#allocation4 + $0x128] sm:$0xff]
    %v2019 = vld [vmem:[#allocation4 + $0x130] sm:$0xff]
    %v2020 = vld [vmem:[#allocation4 + $0x138] sm:$0xff]
    %v2021 = vld [vmem:[#allocation4 + $0x140] sm:$0xff]
    %v2022 = vld [vmem:[#allocation4 + $0x148] sm:$0xff]
    %v2023 = vld [vmem:[#allocation4 + $0x150] sm:$0xff]
    %v2024 = vld [vmem:[#allocation4 + $0x158] sm:$0xff]
    %v2025 = vld [vmem:[#allocation4 + $0x160] sm:$0xff]
    %v2026 = vld [vmem:[#allocation4 + $0x168] sm:$0xff]
    %v2027 = vld [vmem:[#allocation4 + $0x170] sm:$0xff]
    %v2028 = vld [vmem:[#allocation4 + $0x178] sm:$0xff]
    %v2029 = vld [vmem:[#allocation4 + $0x180] sm:$0xff]
    %v2030 = vld [vmem:[#allocation4 + $0x188] sm:$0xff]
    %v2031 = vld [vmem:[#allocation4 + $0x190] sm:$0xff]
    %v2032 = vld [vmem:[#allocation4 + $0x198] sm:$0xff]
    %v2033 = vld [vmem:[#allocation4 + $0x1a0] sm:$0xff]
    %v2034 = vld [vmem:[#allocation4 + $0x1a8] sm:$0xff]
    %v2035 = vld [vmem:[#allocation4 + $0x1b0] sm:$0xff]
    %v2036 = vld [vmem:[#allocation4 + $0x1b8] sm:$0xff]
    %v2037 = vld [vmem:[#allocation4 + $0x1c0] sm:$0xff]
    %v2038 = vld [vmem:[#allocation4 + $0x1c8] sm:$0xff]
    %v2039 = vld [vmem:[#allocation4 + $0x1d0] sm:$0xff]
    %v2040 = vld [vmem:[#allocation4 + $0x1d8] sm:$0xff]
    %v2041 = vld [vmem:[#allocation4 + $0x1e0] sm:$0xff]
    %v2042 = vld [vmem:[#allocation4 + $0x1e8] sm:$0xff]
    %v2043 = vld [vmem:[#allocation4 + $0x1f0] sm:$0xff]
    %v2044 = vld [vmem:[#allocation4 + $0x1f8] sm:$0xff]
    %v2045 = vld [vmem:[#allocation4 + $0x200] sm:$0xff]
    %v2046 = vld [vmem:[#allocation4 + $0x208] sm:$0xff]
    %v2047 = vld [vmem:[#allocation4 + $0x210] sm:$0xff]
    %v2048 = vld [vmem:[#allocation4 + $0x218] sm:$0xff]
    %v2049 = vld [vmem:[#allocation4 + $0x220] sm:$0xff]
    %v2050 = vld [vmem:[#allocation4 + $0x228] sm:$0xff]
    %v2051 = vld [vmem:[#allocation4 + $0x230] sm:$0xff]
    %v2052 = vld [vmem:[#allocation4 + $0x238] sm:$0xff]
    %v2053 = vld [vmem:[#allocation4 + $0x240] sm:$0xff]
    %v2054 = vld [vmem:[#allocation4 + $0x248] sm:$0xff]
    %v2055 = vld [vmem:[#allocation4 + $0x250] sm:$0xff]
    %v2056 = vld [vmem:[#allocation4 + $0x258] sm:$0xff]
    %v2057 = vld [vmem:[#allocation4 + $0x260] sm:$0xff]
    %v2058 = vld [vmem:[#allocation4 + $0x268] sm:$0xff]
    %v2059 = vld [vmem:[#allocation4 + $0x270] sm:$0xff]
    %v2060 = vld [vmem:[#allocation4 + $0x278] sm:$0xff]
    %v2061 = vld [vmem:[#allocation4 + $0x280] sm:$0xff]
    %v2062 = vld [vmem:[#allocation4 + $0x288] sm:$0xff]
    %v2063 = vld [vmem:[#allocation4 + $0x290] sm:$0xff]
    %v2064 = vld [vmem:[#allocation4 + $0x298] sm:$0xff]
    %v2065 = vld [vmem:[#allocation4 + $0x2a0] sm:$0xff]
    %v2066 = vld [vmem:[#allocation4 + $0x2a8] sm:$0xff]
    %v2067 = vld [vmem:[#allocation4 + $0x2b0] sm:$0xff]
    %v2068 = vld [vmem:[#allocation4 + $0x2b8] sm:$0xff]
    %v2069 = vld [vmem:[#allocation4 + $0x2c0] sm:$0xff]
    %v2070 = vld [vmem:[#allocation4 + $0x2c8] sm:$0xff]
    %v2071 = vld [vmem:[#allocation4 + $0x2d0] sm:$0xff]
    %v2072 = vld [vmem:[#allocation4 + $0x2d8] sm:$0xff]
    %v2073 = vld [vmem:[#allocation4 + $0x2e0] sm:$0xff]
    %v2074 = vld [vmem:[#allocation4 + $0x2e8] sm:$0xff]
    %v2075 = vld [vmem:[#allocation4 + $0x2f0] sm:$0xff]
    %v2076 = vld [vmem:[#allocation4 + $0x2f8] sm:$0xff]
    %v2077 = vld [vmem:[#allocation4 + $0x300] sm:$0xff]
    %v2078 = vld [vmem:[#allocation4 + $0x308] sm:$0xff]
    %v2079 = vld [vmem:[#allocation4 + $0x310] sm:$0xff]
    %v2080 = vld [vmem:[#allocation4 + $0x318] sm:$0xff]
    %v2081 = vld [vmem:[#allocation4 + $0x320] sm:$0xff]
    %v2082 = vld [vmem:[#allocation4 + $0x328] sm:$0xff]
    %v2083 = vld [vmem:[#allocation4 + $0x330] sm:$0xff]
    %v2084 = vld [vmem:[#allocation4 + $0x338] sm:$0xff]
    %v2085 = vld [vmem:[#allocation4 + $0x340] sm:$0xff]
    %v2086 = vld [vmem:[#allocation4 + $0x348] sm:$0xff]
    %v2087 = vld [vmem:[#allocation4 + $0x350] sm:$0xff]
    %v2088 = vld [vmem:[#allocation4 + $0x358] sm:$0xff]
    %v2089 = vld [vmem:[#allocation4 + $0x360] sm:$0xff]
    %v2090 = vld [vmem:[#allocation4 + $0x368] sm:$0xff]
    %v2091 = vld [vmem:[#allocation4 + $0x370] sm:$0xff]
    %v2092 = vld [vmem:[#allocation4 + $0x378] sm:$0xff]
    %v2093 = vld [vmem:[#allocation4 + $0x380] sm:$0xff]
    %v2094 = vld [vmem:[#allocation4 + $0x388] sm:$0xff]
    %v2095 = vld [vmem:[#allocation4 + $0x390] sm:$0xff]
    %v2096 = vld [vmem:[#allocation4 + $0x398] sm:$0xff]
    %v2097 = vld [vmem:[#allocation4 + $0x3a0] sm:$0xff]
    %v2098 = vld [vmem:[#allocation4 + $0x3a8] sm:$0xff]
    %v2099 = vld [vmem:[#allocation4 + $0x3b0] sm:$0xff]
    %v2100 = vld [vmem:[#allocation4 + $0x3b8] sm:$0xff]
    %v2101 = vld [vmem:[#allocation4 + $0x3c0] sm:$0xff]
    %v2102 = vld [vmem:[#allocation4 + $0x3c8] sm:$0xff]
    %v2103 = vld [vmem:[#allocation4 + $0x3d0] sm:$0xff]
    %v2104 = vld [vmem:[#allocation4 + $0x3d8] sm:$0xff]
    %v2105 = vld [vmem:[#allocation4 + $0x3e0] sm:$0xff]
    %v2106 = vld [vmem:[#allocation4 + $0x3e8] sm:$0xff]
    %v2107 = vld [vmem:[#allocation4 + $0x3f0] sm:$0xff]
    %v2108 = vld [vmem:[#allocation4 + $0x3f8] sm:$0xff]
    %v2109 = vld [vmem:[%s4] sm:$0xf]
    %v2111 = vlaneseq
    %v2112 = vshrl.u32 %v2111, 7
    %v2113 = vsub.s32 0, %v2112
    %v2114 = vrot.slane %v2109, %v2113
    %v2115 = vlaneseq
    %v2116 = vshrl.u32 %v2115, 7
    %v2117 = vsub.s32 1, %v2116
    %v2118 = vrot.slane %v2109, %v2117
    %v2119 = vlaneseq
    %v2120 = vshrl.u32 %v2119, 7
    %v2121 = vsub.s32 2, %v2120
    %v2122 = vrot.slane %v2109, %v2121
    %v2123 = vlaneseq
    %v2124 = vshrl.u32 %v2123, 7
    %v2125 = vsub.s32 3, %v2124
    %v2126 = vrot.slane %v2109, %v2125
    %v2259 = vunpack.c.l.b16 %v1981
    %v2260 = vunpack.c.h.b16 %v1981
    %v2261 = vunpack.c.l.b16 %v1982
    %v2262 = vunpack.c.h.b16 %v1982
    %v2263 = vunpack.c.l.b16 %v1983
    %v2264 = vunpack.c.h.b16 %v1983
    %v2265 = vunpack.c.l.b16 %v1984
    %v2266 = vunpack.c.h.b16 %v1984
    %v2267 = vunpack.c.l.b16 %v1985
    %v2268 = vunpack.c.h.b16 %v1985
    %v2269 = vunpack.c.l.b16 %v1986
    %v2270 = vunpack.c.h.b16 %v1986
    %v2271 = vunpack.c.l.b16 %v1987
    %v2272 = vunpack.c.h.b16 %v1987
    %v2273 = vunpack.c.l.b16 %v1988
    %v2274 = vunpack.c.h.b16 %v1988
    %v2275 = vunpack.c.l.b16 %v1989
    %v2276 = vunpack.c.h.b16 %v1989
    %v2277 = vunpack.c.l.b16 %v1990
    %v2278 = vunpack.c.h.b16 %v1990
    %v2279 = vunpack.c.l.b16 %v1991
    %v2280 = vunpack.c.h.b16 %v1991
    %v2281 = vunpack.c.l.b16 %v1992
    %v2282 = vunpack.c.h.b16 %v1992
    %v2283 = vunpack.c.l.b16 %v1993
    %v2284 = vunpack.c.h.b16 %v1993
    %v2285 = vunpack.c.l.b16 %v1994
    %v2286 = vunpack.c.h.b16 %v1994
    %v2287 = vunpack.c.l.b16 %v1995
    %v2288 = vunpack.c.h.b16 %v1995
    %v2289 = vunpack.c.l.b16 %v1996
    %v2290 = vunpack.c.h.b16 %v1996
    %v2291 = vunpack.c.l.b16 %v1997
    %v2292 = vunpack.c.h.b16 %v1997
    %v2293 = vunpack.c.l.b16 %v1998
    %v2294 = vunpack.c.h.b16 %v1998
    %v2295 = vunpack.c.l.b16 %v1999
    %v2296 = vunpack.c.h.b16 %v1999
    %v2297 = vunpack.c.l.b16 %v2000
    %v2298 = vunpack.c.h.b16 %v2000
    %v2299 = vunpack.c.l.b16 %v2001
    %v2300 = vunpack.c.h.b16 %v2001
    %v2301 = vunpack.c.l.b16 %v2002
    %v2302 = vunpack.c.h.b16 %v2002
    %v2303 = vunpack.c.l.b16 %v2003
    %v2304 = vunpack.c.h.b16 %v2003
    %v2305 = vunpack.c.l.b16 %v2004
    %v2306 = vunpack.c.h.b16 %v2004
    %v2307 = vunpack.c.l.b16 %v2005
    %v2308 = vunpack.c.h.b16 %v2005
    %v2309 = vunpack.c.l.b16 %v2006
    %v2310 = vunpack.c.h.b16 %v2006
    %v2311 = vunpack.c.l.b16 %v2007
    %v2312 = vunpack.c.h.b16 %v2007
    %v2313 = vunpack.c.l.b16 %v2008
    %v2314 = vunpack.c.h.b16 %v2008
    %v2315 = vunpack.c.l.b16 %v2009
    %v2316 = vunpack.c.h.b16 %v2009
    %v2317 = vunpack.c.l.b16 %v2010
    %v2318 = vunpack.c.h.b16 %v2010
    %v2319 = vunpack.c.l.b16 %v2011
    %v2320 = vunpack.c.h.b16 %v2011
    %v2321 = vunpack.c.l.b16 %v2012
    %v2322 = vunpack.c.h.b16 %v2012
    %v2323 = vunpack.c.l.b16 %v2013
    %v2324 = vunpack.c.h.b16 %v2013
    %v2325 = vunpack.c.l.b16 %v2014
    %v2326 = vunpack.c.h.b16 %v2014
    %v2327 = vunpack.c.l.b16 %v2015
    %v2328 = vunpack.c.h.b16 %v2015
    %v2329 = vunpack.c.l.b16 %v2016
    %v2330 = vunpack.c.h.b16 %v2016
    %v2331 = vunpack.c.l.b16 %v2017
    %v2332 = vunpack.c.h.b16 %v2017
    %v2333 = vunpack.c.l.b16 %v2018
    %v2334 = vunpack.c.h.b16 %v2018
    %v2335 = vunpack.c.l.b16 %v2019
    %v2336 = vunpack.c.h.b16 %v2019
    %v2337 = vunpack.c.l.b16 %v2020
    %v2338 = vunpack.c.h.b16 %v2020
    %v2339 = vunpack.c.l.b16 %v2021
    %v2340 = vunpack.c.h.b16 %v2021
    %v2341 = vunpack.c.l.b16 %v2022
    %v2342 = vunpack.c.h.b16 %v2022
    %v2343 = vunpack.c.l.b16 %v2023
    %v2344 = vunpack.c.h.b16 %v2023
    %v2345 = vunpack.c.l.b16 %v2024
    %v2346 = vunpack.c.h.b16 %v2024
    %v2347 = vunpack.c.l.b16 %v2025
    %v2348 = vunpack.c.h.b16 %v2025
    %v2349 = vunpack.c.l.b16 %v2026
    %v2350 = vunpack.c.h.b16 %v2026
    %v2351 = vunpack.c.l.b16 %v2027
    %v2352 = vunpack.c.h.b16 %v2027
    %v2353 = vunpack.c.l.b16 %v2028
    %v2354 = vunpack.c.h.b16 %v2028
    %v2355 = vunpack.c.l.b16 %v2029
    %v2356 = vunpack.c.h.b16 %v2029
    %v2357 = vunpack.c.l.b16 %v2030
    %v2358 = vunpack.c.h.b16 %v2030
    %v2359 = vunpack.c.l.b16 %v2031
    %v2360 = vunpack.c.h.b16 %v2031
    %v2361 = vunpack.c.l.b16 %v2032
    %v2362 = vunpack.c.h.b16 %v2032
    %v2363 = vunpack.c.l.b16 %v2033
    %v2364 = vunpack.c.h.b16 %v2033
    %v2365 = vunpack.c.l.b16 %v2034
    %v2366 = vunpack.c.h.b16 %v2034
    %v2367 = vunpack.c.l.b16 %v2035
    %v2368 = vunpack.c.h.b16 %v2035
    %v2369 = vunpack.c.l.b16 %v2036
    %v2370 = vunpack.c.h.b16 %v2036
    %v2371 = vunpack.c.l.b16 %v2037
    %v2372 = vunpack.c.h.b16 %v2037
    %v2373 = vunpack.c.l.b16 %v2038
    %v2374 = vunpack.c.h.b16 %v2038
    %v2375 = vunpack.c.l.b16 %v2039
    %v2376 = vunpack.c.h.b16 %v2039
    %v2377 = vunpack.c.l.b16 %v2040
    %v2378 = vunpack.c.h.b16 %v2040
    %v2379 = vunpack.c.l.b16 %v2041
    %v2380 = vunpack.c.h.b16 %v2041
    %v2381 = vunpack.c.l.b16 %v2042
    %v2382 = vunpack.c.h.b16 %v2042
    %v2383 = vunpack.c.l.b16 %v2043
    %v2384 = vunpack.c.h.b16 %v2043
    %v2385 = vunpack.c.l.b16 %v2044
    %v2386 = vunpack.c.h.b16 %v2044
    %v2387 = vunpack.c.l.b16 %v2045
    %v2388 = vunpack.c.h.b16 %v2045
    %v2389 = vunpack.c.l.b16 %v2046
    %v2390 = vunpack.c.h.b16 %v2046
    %v2391 = vunpack.c.l.b16 %v2047
    %v2392 = vunpack.c.h.b16 %v2047
    %v2393 = vunpack.c.l.b16 %v2048
    %v2394 = vunpack.c.h.b16 %v2048
    %v2395 = vunpack.c.l.b16 %v2049
    %v2396 = vunpack.c.h.b16 %v2049
    %v2397 = vunpack.c.l.b16 %v2050
    %v2398 = vunpack.c.h.b16 %v2050
    %v2399 = vunpack.c.l.b16 %v2051
    %v2400 = vunpack.c.h.b16 %v2051
    %v2401 = vunpack.c.l.b16 %v2052
    %v2402 = vunpack.c.h.b16 %v2052
    %v2403 = vunpack.c.l.b16 %v2053
    %v2404 = vunpack.c.h.b16 %v2053
    %v2405 = vunpack.c.l.b16 %v2054
    %v2406 = vunpack.c.h.b16 %v2054
    %v2407 = vunpack.c.l.b16 %v2055
    %v2408 = vunpack.c.h.b16 %v2055
    %v2409 = vunpack.c.l.b16 %v2056
    %v2410 = vunpack.c.h.b16 %v2056
    %v2411 = vunpack.c.l.b16 %v2057
    %v2412 = vunpack.c.h.b16 %v2057
    %v2413 = vunpack.c.l.b16 %v2058
    %v2414 = vunpack.c.h.b16 %v2058
    %v2415 = vunpack.c.l.b16 %v2059
    %v2416 = vunpack.c.h.b16 %v2059
    %v2417 = vunpack.c.l.b16 %v2060
    %v2418 = vunpack.c.h.b16 %v2060
    %v2419 = vunpack.c.l.b16 %v2061
    %v2420 = vunpack.c.h.b16 %v2061
    %v2421 = vunpack.c.l.b16 %v2062
    %v2422 = vunpack.c.h.b16 %v2062
    %v2423 = vunpack.c.l.b16 %v2063
    %v2424 = vunpack.c.h.b16 %v2063
    %v2425 = vunpack.c.l.b16 %v2064
    %v2426 = vunpack.c.h.b16 %v2064
    %v2427 = vunpack.c.l.b16 %v2065
    %v2428 = vunpack.c.h.b16 %v2065
    %v2429 = vunpack.c.l.b16 %v2066
    %v2430 = vunpack.c.h.b16 %v2066
    %v2431 = vunpack.c.l.b16 %v2067
    %v2432 = vunpack.c.h.b16 %v2067
    %v2433 = vunpack.c.l.b16 %v2068
    %v2434 = vunpack.c.h.b16 %v2068
    %v2435 = vunpack.c.l.b16 %v2069
    %v2436 = vunpack.c.h.b16 %v2069
    %v2437 = vunpack.c.l.b16 %v2070
    %v2438 = vunpack.c.h.b16 %v2070
    %v2439 = vunpack.c.l.b16 %v2071
    %v2440 = vunpack.c.h.b16 %v2071
    %v2441 = vunpack.c.l.b16 %v2072
    %v2442 = vunpack.c.h.b16 %v2072
    %v2443 = vunpack.c.l.b16 %v2073
    %v2444 = vunpack.c.h.b16 %v2073
    %v2445 = vunpack.c.l.b16 %v2074
    %v2446 = vunpack.c.h.b16 %v2074
    %v2447 = vunpack.c.l.b16 %v2075
    %v2448 = vunpack.c.h.b16 %v2075
    %v2449 = vunpack.c.l.b16 %v2076
    %v2450 = vunpack.c.h.b16 %v2076
    %v2451 = vunpack.c.l.b16 %v2077
    %v2452 = vunpack.c.h.b16 %v2077
    %v2453 = vunpack.c.l.b16 %v2078
    %v2454 = vunpack.c.h.b16 %v2078
    %v2455 = vunpack.c.l.b16 %v2079
    %v2456 = vunpack.c.h.b16 %v2079
    %v2457 = vunpack.c.l.b16 %v2080
    %v2458 = vunpack.c.h.b16 %v2080
    %v2459 = vunpack.c.l.b16 %v2081
    %v2460 = vunpack.c.h.b16 %v2081
    %v2461 = vunpack.c.l.b16 %v2082
    %v2462 = vunpack.c.h.b16 %v2082
    %v2463 = vunpack.c.l.b16 %v2083
    %v2464 = vunpack.c.h.b16 %v2083
    %v2465 = vunpack.c.l.b16 %v2084
    %v2466 = vunpack.c.h.b16 %v2084
    %v2467 = vunpack.c.l.b16 %v2085
    %v2468 = vunpack.c.h.b16 %v2085
    %v2469 = vunpack.c.l.b16 %v2086
    %v2470 = vunpack.c.h.b16 %v2086
    %v2471 = vunpack.c.l.b16 %v2087
    %v2472 = vunpack.c.h.b16 %v2087
    %v2473 = vunpack.c.l.b16 %v2088
    %v2474 = vunpack.c.h.b16 %v2088
    %v2475 = vunpack.c.l.b16 %v2089
    %v2476 = vunpack.c.h.b16 %v2089
    %v2477 = vunpack.c.l.b16 %v2090
    %v2478 = vunpack.c.h.b16 %v2090
    %v2479 = vunpack.c.l.b16 %v2091
    %v2480 = vunpack.c.h.b16 %v2091
    %v2481 = vunpack.c.l.b16 %v2092
    %v2482 = vunpack.c.h.b16 %v2092
    %v2483 = vunpack.c.l.b16 %v2093
    %v2484 = vunpack.c.h.b16 %v2093
    %v2485 = vunpack.c.l.b16 %v2094
    %v2486 = vunpack.c.h.b16 %v2094
    %v2487 = vunpack.c.l.b16 %v2095
    %v2488 = vunpack.c.h.b16 %v2095
    %v2489 = vunpack.c.l.b16 %v2096
    %v2490 = vunpack.c.h.b16 %v2096
    %v2491 = vunpack.c.l.b16 %v2097
    %v2492 = vunpack.c.h.b16 %v2097
    %v2493 = vunpack.c.l.b16 %v2098
    %v2494 = vunpack.c.h.b16 %v2098
    %v2495 = vunpack.c.l.b16 %v2099
    %v2496 = vunpack.c.h.b16 %v2099
    %v2497 = vunpack.c.l.b16 %v2100
    %v2498 = vunpack.c.h.b16 %v2100
    %v2499 = vunpack.c.l.b16 %v2101
    %v2500 = vunpack.c.h.b16 %v2101
    %v2501 = vunpack.c.l.b16 %v2102
    %v2502 = vunpack.c.h.b16 %v2102
    %v2503 = vunpack.c.l.b16 %v2103
    %v2504 = vunpack.c.h.b16 %v2103
    %v2505 = vunpack.c.l.b16 %v2104
    %v2506 = vunpack.c.h.b16 %v2104
    %v2507 = vunpack.c.l.b16 %v2105
    %v2508 = vunpack.c.h.b16 %v2105
    %v2509 = vunpack.c.l.b16 %v2106
    %v2510 = vunpack.c.h.b16 %v2106
    %v2511 = vunpack.c.l.b16 %v2107
    %v2512 = vunpack.c.h.b16 %v2107
    %v2513 = vunpack.c.l.b16 %v2108
    %v2514 = vunpack.c.h.b16 %v2108
    %v2515 = vpack.c.b16 %v2263, %v2259
    %v2516 = vpack.c.b16 %v2264, %v2260
    %v2517 = vpack.c.b16 %v2265, %v2261
    %v2518 = vpack.c.b16 %v2266, %v2262
    %v2519 = vpack.c.b16 %v2271, %v2267
    %v2520 = vpack.c.b16 %v2272, %v2268
    %v2521 = vpack.c.b16 %v2273, %v2269
    %v2522 = vpack.c.b16 %v2274, %v2270
    %v2523 = vpack.c.b16 %v2279, %v2275
    %v2524 = vpack.c.b16 %v2280, %v2276
    %v2525 = vpack.c.b16 %v2281, %v2277
    %v2526 = vpack.c.b16 %v2282, %v2278
    %v2527 = vpack.c.b16 %v2287, %v2283
    %v2528 = vpack.c.b16 %v2288, %v2284
    %v2529 = vpack.c.b16 %v2289, %v2285
    %v2530 = vpack.c.b16 %v2290, %v2286
    %v2531 = vpack.c.b16 %v2295, %v2291
    %v2532 = vpack.c.b16 %v2296, %v2292
    %v2533 = vpack.c.b16 %v2297, %v2293
    %v2534 = vpack.c.b16 %v2298, %v2294
    %v2535 = vpack.c.b16 %v2303, %v2299
    %v2536 = vpack.c.b16 %v2304, %v2300
    %v2537 = vpack.c.b16 %v2305, %v2301
    %v2538 = vpack.c.b16 %v2306, %v2302
    %v2539 = vpack.c.b16 %v2311, %v2307
    %v2540 = vpack.c.b16 %v2312, %v2308
    %v2541 = vpack.c.b16 %v2313, %v2309
    %v2542 = vpack.c.b16 %v2314, %v2310
    %v2543 = vpack.c.b16 %v2319, %v2315
    %v2544 = vpack.c.b16 %v2320, %v2316
    %v2545 = vpack.c.b16 %v2321, %v2317
    %v2546 = vpack.c.b16 %v2322, %v2318
    %v2547 = vpack.c.b16 %v2327, %v2323
    %v2548 = vpack.c.b16 %v2328, %v2324
    %v2549 = vpack.c.b16 %v2329, %v2325
    %v2550 = vpack.c.b16 %v2330, %v2326
    %v2551 = vpack.c.b16 %v2335, %v2331
    %v2552 = vpack.c.b16 %v2336, %v2332
    %v2553 = vpack.c.b16 %v2337, %v2333
    %v2554 = vpack.c.b16 %v2338, %v2334
    %v2555 = vpack.c.b16 %v2343, %v2339
    %v2556 = vpack.c.b16 %v2344, %v2340
    %v2557 = vpack.c.b16 %v2345, %v2341
    %v2558 = vpack.c.b16 %v2346, %v2342
    %v2559 = vpack.c.b16 %v2351, %v2347
    %v2560 = vpack.c.b16 %v2352, %v2348
    %v2561 = vpack.c.b16 %v2353, %v2349
    %v2562 = vpack.c.b16 %v2354, %v2350
    %v2563 = vpack.c.b16 %v2359, %v2355
    %v2564 = vpack.c.b16 %v2360, %v2356
    %v2565 = vpack.c.b16 %v2361, %v2357
    %v2566 = vpack.c.b16 %v2362, %v2358
    %v2567 = vpack.c.b16 %v2367, %v2363
    %v2568 = vpack.c.b16 %v2368, %v2364
    %v2569 = vpack.c.b16 %v2369, %v2365
    %v2570 = vpack.c.b16 %v2370, %v2366
    %v2571 = vpack.c.b16 %v2375, %v2371
    %v2572 = vpack.c.b16 %v2376, %v2372
    %v2573 = vpack.c.b16 %v2377, %v2373
    %v2574 = vpack.c.b16 %v2378, %v2374
    %v2575 = vpack.c.b16 %v2383, %v2379
    %v2576 = vpack.c.b16 %v2384, %v2380
    %v2577 = vpack.c.b16 %v2385, %v2381
    %v2578 = vpack.c.b16 %v2386, %v2382
    %v2579 = vpack.c.b16 %v2391, %v2387
    %v2580 = vpack.c.b16 %v2392, %v2388
    %v2581 = vpack.c.b16 %v2393, %v2389
    %v2582 = vpack.c.b16 %v2394, %v2390
    %v2583 = vpack.c.b16 %v2399, %v2395
    %v2584 = vpack.c.b16 %v2400, %v2396
    %v2585 = vpack.c.b16 %v2401, %v2397
    %v2586 = vpack.c.b16 %v2402, %v2398
    %v2587 = vpack.c.b16 %v2407, %v2403
    %v2588 = vpack.c.b16 %v2408, %v2404
    %v2589 = vpack.c.b16 %v2409, %v2405
    %v2590 = vpack.c.b16 %v2410, %v2406
    %v2591 = vpack.c.b16 %v2415, %v2411
    %v2592 = vpack.c.b16 %v2416, %v2412
    %v2593 = vpack.c.b16 %v2417, %v2413
    %v2594 = vpack.c.b16 %v2418, %v2414
    %v2595 = vpack.c.b16 %v2423, %v2419
    %v2596 = vpack.c.b16 %v2424, %v2420
    %v2597 = vpack.c.b16 %v2425, %v2421
    %v2598 = vpack.c.b16 %v2426, %v2422
    %v2599 = vpack.c.b16 %v2431, %v2427
    %v2600 = vpack.c.b16 %v2432, %v2428
    %v2601 = vpack.c.b16 %v2433, %v2429
    %v2602 = vpack.c.b16 %v2434, %v2430
    %v2603 = vpack.c.b16 %v2439, %v2435
    %v2604 = vpack.c.b16 %v2440, %v2436
    %v2605 = vpack.c.b16 %v2441, %v2437
    %v2606 = vpack.c.b16 %v2442, %v2438
    %v2607 = vpack.c.b16 %v2447, %v2443
    %v2608 = vpack.c.b16 %v2448, %v2444
    %v2609 = vpack.c.b16 %v2449, %v2445
    %v2610 = vpack.c.b16 %v2450, %v2446
    %v2611 = vpack.c.b16 %v2455, %v2451
    %v2612 = vpack.c.b16 %v2456, %v2452
    %v2613 = vpack.c.b16 %v2457, %v2453
    %v2614 = vpack.c.b16 %v2458, %v2454
    %v2615 = vpack.c.b16 %v2463, %v2459
    %v2616 = vpack.c.b16 %v2464, %v2460
    %v2617 = vpack.c.b16 %v2465, %v2461
    %v2618 = vpack.c.b16 %v2466, %v2462
    %v2619 = vpack.c.b16 %v2471, %v2467
    %v2620 = vpack.c.b16 %v2472, %v2468
    %v2621 = vpack.c.b16 %v2473, %v2469
    %v2622 = vpack.c.b16 %v2474, %v2470
    %v2623 = vpack.c.b16 %v2479, %v2475
    %v2624 = vpack.c.b16 %v2480, %v2476
    %v2625 = vpack.c.b16 %v2481, %v2477
    %v2626 = vpack.c.b16 %v2482, %v2478
    %v2627 = vpack.c.b16 %v2487, %v2483
    %v2628 = vpack.c.b16 %v2488, %v2484
    %v2629 = vpack.c.b16 %v2489, %v2485
    %v2630 = vpack.c.b16 %v2490, %v2486
    %v2631 = vpack.c.b16 %v2495, %v2491
    %v2632 = vpack.c.b16 %v2496, %v2492
    %v2633 = vpack.c.b16 %v2497, %v2493
    %v2634 = vpack.c.b16 %v2498, %v2494
    %v2635 = vpack.c.b16 %v2503, %v2499
    %v2636 = vpack.c.b16 %v2504, %v2500
    %v2637 = vpack.c.b16 %v2505, %v2501
    %v2638 = vpack.c.b16 %v2506, %v2502
    %v2639 = vpack.c.b16 %v2511, %v2507
    %v2640 = vpack.c.b16 %v2512, %v2508
    %v2641 = vpack.c.b16 %v2513, %v2509
    %v2642 = vpack.c.b16 %v2514, %v2510
    %2771 = vmatprep.subr.bf16.mxu0 %v2516
    %2772 = vmatpush1.bf16.msra.mxu0 %v2515
    %2773 = vmatprep.subr.bf16.mxu0 %v2520
    %2774 = vmatpush1.bf16.msra.mxu0 %v2519
    %2775 = vmatprep.subr.bf16.mxu0 %v2524
    %2776 = vmatpush1.bf16.msra.mxu0 %v2523
    %2777 = vmatprep.subr.bf16.mxu0 %v2528
    %2778 = vmatpush1.bf16.msra.mxu0 %v2527
    %2779 = vmatprep.subr.bf16.mxu0 %v2532
    %2780 = vmatpush1.bf16.msra.mxu0 %v2531
    %2781 = vmatprep.subr.bf16.mxu0 %v2536
    %2782 = vmatpush1.bf16.msra.mxu0 %v2535
    %2783 = vmatprep.subr.bf16.mxu0 %v2540
    %2784 = vmatpush1.bf16.msra.mxu0 %v2539
    %2785 = vmatprep.subr.bf16.mxu0 %v2544
    %2786 = vmatpush1.bf16.msra.mxu0 %v2543
    %2787 = vmatprep.subr.bf16.mxu0 %v2548
    %2788 = vmatpush1.bf16.msra.mxu0 %v2547
    %2789 = vmatprep.subr.bf16.mxu0 %v2552
    %2790 = vmatpush1.bf16.msra.mxu0 %v2551
    %2791 = vmatprep.subr.bf16.mxu0 %v2556
    %2792 = vmatpush1.bf16.msra.mxu0 %v2555
    %2793 = vmatprep.subr.bf16.mxu0 %v2560
    %2794 = vmatpush1.bf16.msra.mxu0 %v2559
    %2795 = vmatprep.subr.bf16.mxu0 %v2564
    %2796 = vmatpush1.bf16.msra.mxu0 %v2563
    %2797 = vmatprep.subr.bf16.mxu0 %v2568
    %2798 = vmatpush1.bf16.msra.mxu0 %v2567
    %2799 = vmatprep.subr.bf16.mxu0 %v2572
    %2800 = vmatpush1.bf16.msra.mxu0 %v2571
    %2801 = vmatprep.subr.bf16.mxu0 %v2576
    %2802 = vmatpush1.bf16.msra.mxu0 %v2575
    %2803 = vmatprep.mubr.bf16.mxu0 %v1978
    %2804 = vmatmul.mubr.bf16.gmra.mrb[0].mxu0 %v1977
    %v2805 = vpop.f32.mrb[0].mxu0
    %v2806 = vadd.f32 %v2114, %v2805
    %v2807 = vpop.f32.mrb[0].mxu0
    %v2808 = vadd.f32 %v2118, %v2807
    %v2809 = vpop.f32.mrb[0].mxu0
    %v2810 = vpop.f32.mrb[0].mxu0
    %2811 = vdwg.mxu0
    %2812 = vmatprep.subr.bf16.mxu0 %v2580
    %2813 = vmatpush1.bf16.msra.mxu0 %v2579
    %2814 = vmatprep.subr.bf16.mxu0 %v2584
    %2815 = vmatpush1.bf16.msra.mxu0 %v2583
    %2816 = vmatprep.subr.bf16.mxu0 %v2588
    %2817 = vmatpush1.bf16.msra.mxu0 %v2587
    %2818 = vmatprep.subr.bf16.mxu0 %v2592
    %2819 = vmatpush1.bf16.msra.mxu0 %v2591
    %2820 = vmatprep.subr.bf16.mxu0 %v2596
    %2821 = vmatpush1.bf16.msra.mxu0 %v2595
    %2822 = vmatprep.subr.bf16.mxu0 %v2600
    %2823 = vmatpush1.bf16.msra.mxu0 %v2599
    %2824 = vmatprep.subr.bf16.mxu0 %v2604
    %2825 = vmatpush1.bf16.msra.mxu0 %v2603
    %2826 = vmatprep.subr.bf16.mxu0 %v2608
    %2827 = vmatpush1.bf16.msra.mxu0 %v2607
    %2828 = vmatprep.subr.bf16.mxu0 %v2612
    %2829 = vmatpush1.bf16.msra.mxu0 %v2611
    %2830 = vmatprep.subr.bf16.mxu0 %v2616
    %2831 = vmatpush1.bf16.msra.mxu0 %v2615
    %2832 = vmatprep.subr.bf16.mxu0 %v2620
    %2833 = vmatpush1.bf16.msra.mxu0 %v2619
    %2834 = vmatprep.subr.bf16.mxu0 %v2624
    %2835 = vmatpush1.bf16.msra.mxu0 %v2623
    %2836 = vmatprep.subr.bf16.mxu0 %v2628
    %2837 = vmatpush1.bf16.msra.mxu0 %v2627
    %2838 = vmatprep.subr.bf16.mxu0 %v2632
    %2839 = vmatpush1.bf16.msra.mxu0 %v2631
    %2840 = vmatprep.subr.bf16.mxu0 %v2636
    %2841 = vmatpush1.bf16.msra.mxu0 %v2635
    %2842 = vmatprep.subr.bf16.mxu0 %v2640
    %2843 = vmatpush1.bf16.msra.mxu0 %v2639
    %2844 = vmatprep.mubr.bf16.mxu0 %v1980
    %2845 = vmatmul.mubr.bf16.gmra.mrb[0].mxu0 %v1979
    %v2846 = vpop.f32.mrb[0].mxu0
    %v2847 = vadd.f32 %v2806, %v2846
    %v2848 = vpop.f32.mrb[0].mxu0
    %v2849 = vadd.f32 %v2808, %v2848
    %v2850 = vpop.f32.mrb[0].mxu0
    %v2851 = vpop.f32.mrb[0].mxu0
    %2852 = vdwg.mxu0
    %2853 = vmatprep.subr.bf16.mxu0 %v2518
    %2854 = vmatpush1.bf16.msra.mxu0 %v2517
    %2855 = vmatprep.subr.bf16.mxu0 %v2522
    %2856 = vmatpush1.bf16.msra.mxu0 %v2521
    %2857 = vmatprep.subr.bf16.mxu0 %v2526
    %2858 = vmatpush1.bf16.msra.mxu0 %v2525
    %2859 = vmatprep.subr.bf16.mxu0 %v2530
    %2860 = vmatpush1.bf16.msra.mxu0 %v2529
    %2861 = vmatprep.subr.bf16.mxu0 %v2534
    %2862 = vmatpush1.bf16.msra.mxu0 %v2533
    %2863 = vmatprep.subr.bf16.mxu0 %v2538
    %2864 = vmatpush1.bf16.msra.mxu0 %v2537
    %2865 = vmatprep.subr.bf16.mxu0 %v2542
    %2866 = vmatpush1.bf16.msra.mxu0 %v2541
    %2867 = vmatprep.subr.bf16.mxu0 %v2546
    %2868 = vmatpush1.bf16.msra.mxu0 %v2545
    %2869 = vmatprep.subr.bf16.mxu0 %v2550
    %2870 = vmatpush1.bf16.msra.mxu0 %v2549
    %2871 = vmatprep.subr.bf16.mxu0 %v2554
    %2872 = vmatpush1.bf16.msra.mxu0 %v2553
    %2873 = vmatprep.subr.bf16.mxu0 %v2558
    %2874 = vmatpush1.bf16.msra.mxu0 %v2557
    %2875 = vmatprep.subr.bf16.mxu0 %v2562
    %2876 = vmatpush1.bf16.msra.mxu0 %v2561
    %2877 = vmatprep.subr.bf16.mxu0 %v2566
    %2878 = vmatpush1.bf16.msra.mxu0 %v2565
    %2879 = vmatprep.subr.bf16.mxu0 %v2570
    %2880 = vmatpush1.bf16.msra.mxu0 %v2569
    %2881 = vmatprep.subr.bf16.mxu0 %v2574
    %2882 = vmatpush1.bf16.msra.mxu0 %v2573
    %2883 = vmatprep.subr.bf16.mxu0 %v2578
    %2884 = vmatpush1.bf16.msra.mxu0 %v2577
    %2885 = vmatprep.mubr.bf16.mxu0 %v1978
    %2886 = vmatmul.mubr.bf16.gmra.mrb[0].mxu0 %v1977
    %v2887 = vpop.f32.mrb[0].mxu0
    %v2888 = vadd.f32 %v2122, %v2887
    %v2889 = vpop.f32.mrb[0].mxu0
    %v2890 = vadd.f32 %v2126, %v2889
    %v2891 = vpop.f32.mrb[0].mxu0
    %v2892 = vpop.f32.mrb[0].mxu0
    %2893 = vdwg.mxu0
    %2894 = vmatprep.subr.bf16.mxu0 %v2582
    %2895 = vmatpush1.bf16.msra.mxu0 %v2581
    %2896 = vmatprep.subr.bf16.mxu0 %v2586
    %2897 = vmatpush1.bf16.msra.mxu0 %v2585
    %2898 = vmatprep.subr.bf16.mxu0 %v2590
    %2899 = vmatpush1.bf16.msra.mxu0 %v2589
    %2900 = vmatprep.subr.bf16.mxu0 %v2594
    %2901 = vmatpush1.bf16.msra.mxu0 %v2593
    %2902 = vmatprep.subr.bf16.mxu0 %v2598
    %2903 = vmatpush1.bf16.msra.mxu0 %v2597
    %2904 = vmatprep.subr.bf16.mxu0 %v2602
    %2905 = vmatpush1.bf16.msra.mxu0 %v2601
    %2906 = vmatprep.subr.bf16.mxu0 %v2606
    %2907 = vmatpush1.bf16.msra.mxu0 %v2605
    %2908 = vmatprep.subr.bf16.mxu0 %v2610
    %2909 = vmatpush1.bf16.msra.mxu0 %v2609
    %2910 = vmatprep.subr.bf16.mxu0 %v2614
    %2911 = vmatpush1.bf16.msra.mxu0 %v2613
    %2912 = vmatprep.subr.bf16.mxu0 %v2618
    %2913 = vmatpush1.bf16.msra.mxu0 %v2617
    %2914 = vmatprep.subr.bf16.mxu0 %v2622
    %2915 = vmatpush1.bf16.msra.mxu0 %v2621
    %2916 = vmatprep.subr.bf16.mxu0 %v2626
    %2917 = vmatpush1.bf16.msra.mxu0 %v2625
    %2918 = vmatprep.subr.bf16.mxu0 %v2630
    %2919 = vmatpush1.bf16.msra.mxu0 %v2629
    %2920 = vmatprep.subr.bf16.mxu0 %v2634
    %2921 = vmatpush1.bf16.msra.mxu0 %v2633
    %2922 = vmatprep.subr.bf16.mxu0 %v2638
    %2923 = vmatpush1.bf16.msra.mxu0 %v2637
    %2924 = vmatprep.subr.bf16.mxu0 %v2642
    %2925 = vmatpush1.bf16.msra.mxu0 %v2641
    %2926 = vmatprep.mubr.bf16.mxu0 %v1980
    %2927 = vmatmul.mubr.bf16.gmra.mrb[0].mxu0 %v1979
    %v2928 = vpop.f32.mrb[0].mxu0
    %v2929 = vadd.f32 %v2888, %v2928
    %v2930 = vpop.f32.mrb[0].mxu0
    %v2931 = vadd.f32 %v2890, %v2930
    %v2932 = vpop.f32.mrb[0].mxu0
    %v2933 = vpop.f32.mrb[0].mxu0
    %2934 = vdwg.mxu0
    %v2935 = vmax.f32 %v2847, 0.0
    %v2936 = vmax.f32 %v2849, 0.0
    %v2937 = vmax.f32 %v2929, 0.0
    %v2938 = vmax.f32 %v2931, 0.0
    %v2939 = vpack.c.bf16 %v2935, %v2935
    %v2940 = vpack.c.bf16 %v2936, %v2936
    %v2941 = vpack.c.bf16 %v2937, %v2937
    %v2942 = vpack.c.bf16 %v2938, %v2938
    %v2943 = vld [vmem:[%s5] sm:$0xf]
    %v2944 = vld [vmem:[%s5 + $0x4] sm:$0xf]
    %v2945 = vld [vmem:[%s5 + $0x8] sm:$0xf]
    %v2946 = vld [vmem:[%s5 + $0xc] sm:$0xf]
    %v2947 = vld [vmem:[%s5 + $0x10] sm:$0xf]
    %v2948 = vld [vmem:[%s5 + $0x14] sm:$0xf]
    %v2949 = vld [vmem:[%s5 + $0x18] sm:$0xf]
    %v2950 = vld [vmem:[%s5 + $0x1c] sm:$0xf]
    %v2951 = vld [vmem:[%s5 + $0x20] sm:$0xf]
    %v2952 = vld [vmem:[%s5 + $0x24] sm:$0xf]
    %v2953 = vld [vmem:[%s5 + $0x28] sm:$0xf]
    %v2954 = vld [vmem:[%s5 + $0x2c] sm:$0xf]
    %v2955 = vld [vmem:[%s5 + $0x30] sm:$0xf]
    %v2956 = vld [vmem:[%s5 + $0x34] sm:$0xf]
    %v2957 = vld [vmem:[%s5 + $0x38] sm:$0xf]
    %v2958 = vld [vmem:[%s5 + $0x3c] sm:$0xf]
    %v2959 = vld [vmem:[%s5 + $0x40] sm:$0xf]
    %v2960 = vld [vmem:[%s5 + $0x44] sm:$0xf]
    %v2961 = vld [vmem:[%s5 + $0x48] sm:$0xf]
    %v2962 = vld [vmem:[%s5 + $0x4c] sm:$0xf]
    %v2963 = vld [vmem:[%s5 + $0x50] sm:$0xf]
    %v2964 = vld [vmem:[%s5 + $0x54] sm:$0xf]
    %v2965 = vld [vmem:[%s5 + $0x58] sm:$0xf]
    %v2966 = vld [vmem:[%s5 + $0x5c] sm:$0xf]
    %v2967 = vld [vmem:[%s5 + $0x60] sm:$0xf]
    %v2968 = vld [vmem:[%s5 + $0x64] sm:$0xf]
    %v2969 = vld [vmem:[%s5 + $0x68] sm:$0xf]
    %v2970 = vld [vmem:[%s5 + $0x6c] sm:$0xf]
    %v2971 = vld [vmem:[%s5 + $0x70] sm:$0xf]
    %v2972 = vld [vmem:[%s5 + $0x74] sm:$0xf]
    %v2973 = vld [vmem:[%s5 + $0x78] sm:$0xf]
    %v2974 = vld [vmem:[%s5 + $0x7c] sm:$0xf]
    %v2975 = vld [vmem:[%s5 + $0x80] sm:$0xf]
    %v2976 = vld [vmem:[%s5 + $0x84] sm:$0xf]
    %v2977 = vld [vmem:[%s5 + $0x88] sm:$0xf]
    %v2978 = vld [vmem:[%s5 + $0x8c] sm:$0xf]
    %v2979 = vld [vmem:[%s5 + $0x90] sm:$0xf]
    %v2980 = vld [vmem:[%s5 + $0x94] sm:$0xf]
    %v2981 = vld [vmem:[%s5 + $0x98] sm:$0xf]
    %v2982 = vld [vmem:[%s5 + $0x9c] sm:$0xf]
    %v2983 = vld [vmem:[%s5 + $0xa0] sm:$0xf]
    %v2984 = vld [vmem:[%s5 + $0xa4] sm:$0xf]
    %v2985 = vld [vmem:[%s5 + $0xa8] sm:$0xf]
    %v2986 = vld [vmem:[%s5 + $0xac] sm:$0xf]
    %v2987 = vld [vmem:[%s5 + $0xb0] sm:$0xf]
    %v2988 = vld [vmem:[%s5 + $0xb4] sm:$0xf]
    %v2989 = vld [vmem:[%s5 + $0xb8] sm:$0xf]
    %v2990 = vld [vmem:[%s5 + $0xbc] sm:$0xf]
    %v2991 = vld [vmem:[%s5 + $0xc0] sm:$0xf]
    %v2992 = vld [vmem:[%s5 + $0xc4] sm:$0xf]
    %v2993 = vld [vmem:[%s5 + $0xc8] sm:$0xf]
    %v2994 = vld [vmem:[%s5 + $0xcc] sm:$0xf]
    %v2995 = vld [vmem:[%s5 + $0xd0] sm:$0xf]
    %v2996 = vld [vmem:[%s5 + $0xd4] sm:$0xf]
    %v2997 = vld [vmem:[%s5 + $0xd8] sm:$0xf]
    %v2998 = vld [vmem:[%s5 + $0xdc] sm:$0xf]
    %v2999 = vld [vmem:[%s5 + $0xe0] sm:$0xf]
    %v3000 = vld [vmem:[%s5 + $0xe4] sm:$0xf]
    %v3001 = vld [vmem:[%s5 + $0xe8] sm:$0xf]
    %v3002 = vld [vmem:[%s5 + $0xec] sm:$0xf]
    %v3003 = vld [vmem:[%s5 + $0xf0] sm:$0xf]
    %v3004 = vld [vmem:[%s5 + $0xf4] sm:$0xf]
    %v3005 = vld [vmem:[%s5 + $0xf8] sm:$0xf]
    %v3006 = vld [vmem:[%s5 + $0xfc] sm:$0xf]
    %v3007 = vld [vmem:[%s6] sm:$0x1]
    %v3009 = vlaneseq
    %v3010 = vshrl.u32 %v3009, 7
    %v3011 = vsub.s32 0, %v3010
    %v3012 = vrot.slane %v3007, %v3011
    %v3078 = vunpack.c.l.b16 %v2943
    %v3079 = vunpack.c.l.b16 %v2944
    %v3080 = vunpack.c.l.b16 %v2945
    %v3081 = vunpack.c.l.b16 %v2946
    %v3082 = vunpack.c.l.b16 %v2947
    %v3083 = vunpack.c.l.b16 %v2948
    %v3084 = vunpack.c.l.b16 %v2949
    %v3085 = vunpack.c.l.b16 %v2950
    %v3086 = vunpack.c.l.b16 %v2951
    %v3087 = vunpack.c.l.b16 %v2952
    %v3088 = vunpack.c.l.b16 %v2953
    %v3089 = vunpack.c.l.b16 %v2954
    %v3090 = vunpack.c.l.b16 %v2955
    %v3091 = vunpack.c.l.b16 %v2956
    %v3092 = vunpack.c.l.b16 %v2957
    %v3093 = vunpack.c.l.b16 %v2958
    %v3094 = vunpack.c.l.b16 %v2959
    %v3095 = vunpack.c.l.b16 %v2960
    %v3096 = vunpack.c.l.b16 %v2961
    %v3097 = vunpack.c.l.b16 %v2962
    %v3098 = vunpack.c.l.b16 %v2963
    %v3099 = vunpack.c.l.b16 %v2964
    %v3100 = vunpack.c.l.b16 %v2965
    %v3101 = vunpack.c.l.b16 %v2966
    %v3102 = vunpack.c.l.b16 %v2967
    %v3103 = vunpack.c.l.b16 %v2968
    %v3104 = vunpack.c.l.b16 %v2969
    %v3105 = vunpack.c.l.b16 %v2970
    %v3106 = vunpack.c.l.b16 %v2971
    %v3107 = vunpack.c.l.b16 %v2972
    %v3108 = vunpack.c.l.b16 %v2973
    %v3109 = vunpack.c.l.b16 %v2974
    %v3110 = vunpack.c.l.b16 %v2975
    %v3111 = vunpack.c.l.b16 %v2976
    %v3112 = vunpack.c.l.b16 %v2977
    %v3113 = vunpack.c.l.b16 %v2978
    %v3114 = vunpack.c.l.b16 %v2979
    %v3115 = vunpack.c.l.b16 %v2980
    %v3116 = vunpack.c.l.b16 %v2981
    %v3117 = vunpack.c.l.b16 %v2982
    %v3118 = vunpack.c.l.b16 %v2983
    %v3119 = vunpack.c.l.b16 %v2984
    %v3120 = vunpack.c.l.b16 %v2985
    %v3121 = vunpack.c.l.b16 %v2986
    %v3122 = vunpack.c.l.b16 %v2987
    %v3123 = vunpack.c.l.b16 %v2988
    %v3124 = vunpack.c.l.b16 %v2989
    %v3125 = vunpack.c.l.b16 %v2990
    %v3126 = vunpack.c.l.b16 %v2991
    %v3127 = vunpack.c.l.b16 %v2992
    %v3128 = vunpack.c.l.b16 %v2993
    %v3129 = vunpack.c.l.b16 %v2994
    %v3130 = vunpack.c.l.b16 %v2995
    %v3131 = vunpack.c.l.b16 %v2996
    %v3132 = vunpack.c.l.b16 %v2997
    %v3133 = vunpack.c.l.b16 %v2998
    %v3134 = vunpack.c.l.b16 %v2999
    %v3135 = vunpack.c.l.b16 %v3000
    %v3136 = vunpack.c.l.b16 %v3001
    %v3137 = vunpack.c.l.b16 %v3002
    %v3138 = vunpack.c.l.b16 %v3003
    %v3139 = vunpack.c.l.b16 %v3004
    %v3140 = vunpack.c.l.b16 %v3005
    %v3141 = vunpack.c.l.b16 %v3006
    %v3142 = vpack.c.b16 %v3079, %v3078
    %v3143 = vpack.c.b16 %v3081, %v3080
    %v3144 = vpack.c.b16 %v3083, %v3082
    %v3145 = vpack.c.b16 %v3085, %v3084
    %v3146 = vpack.c.b16 %v3087, %v3086
    %v3147 = vpack.c.b16 %v3089, %v3088
    %v3148 = vpack.c.b16 %v3091, %v3090
    %v3149 = vpack.c.b16 %v3093, %v3092
    %v3150 = vpack.c.b16 %v3095, %v3094
    %v3151 = vpack.c.b16 %v3097, %v3096
    %v3152 = vpack.c.b16 %v3099, %v3098
    %v3153 = vpack.c.b16 %v3101, %v3100
    %v3154 = vpack.c.b16 %v3103, %v3102
    %v3155 = vpack.c.b16 %v3105, %v3104
    %v3156 = vpack.c.b16 %v3107, %v3106
    %v3157 = vpack.c.b16 %v3109, %v3108
    %v3158 = vpack.c.b16 %v3111, %v3110
    %v3159 = vpack.c.b16 %v3113, %v3112
    %v3160 = vpack.c.b16 %v3115, %v3114
    %v3161 = vpack.c.b16 %v3117, %v3116
    %v3162 = vpack.c.b16 %v3119, %v3118
    %v3163 = vpack.c.b16 %v3121, %v3120
    %v3164 = vpack.c.b16 %v3123, %v3122
    %v3165 = vpack.c.b16 %v3125, %v3124
    %v3166 = vpack.c.b16 %v3127, %v3126
    %v3167 = vpack.c.b16 %v3129, %v3128
    %v3168 = vpack.c.b16 %v3131, %v3130
    %v3169 = vpack.c.b16 %v3133, %v3132
    %v3170 = vpack.c.b16 %v3135, %v3134
    %v3171 = vpack.c.b16 %v3137, %v3136
    %v3172 = vpack.c.b16 %v3139, %v3138
    %v3173 = vpack.c.b16 %v3141, %v3140
    %3206 = vmatprep.subr.bf16.mxu0 0
    %3207 = vmatpush1.bf16.msra.mxu0 %v3142
    %3208 = vmatprep.subr.bf16.mxu0 0
    %3209 = vmatpush1.bf16.msra.mxu0 %v3143
    %3210 = vmatprep.subr.bf16.mxu0 0
    %3211 = vmatpush1.bf16.msra.mxu0 %v3144
    %3212 = vmatprep.subr.bf16.mxu0 0
    %3213 = vmatpush1.bf16.msra.mxu0 %v3145
    %3214 = vmatprep.subr.bf16.mxu0 0
    %3215 = vmatpush1.bf16.msra.mxu0 %v3146
    %3216 = vmatprep.subr.bf16.mxu0 0
    %3217 = vmatpush1.bf16.msra.mxu0 %v3147
    %3218 = vmatprep.subr.bf16.mxu0 0
    %3219 = vmatpush1.bf16.msra.mxu0 %v3148
    %3220 = vmatprep.subr.bf16.mxu0 0
    %3221 = vmatpush1.bf16.msra.mxu0 %v3149
    %3222 = vmatprep.subr.bf16.mxu0 0
    %3223 = vmatpush1.bf16.msra.mxu0 %v3150
    %3224 = vmatprep.subr.bf16.mxu0 0
    %3225 = vmatpush1.bf16.msra.mxu0 %v3151
    %3226 = vmatprep.subr.bf16.mxu0 0
    %3227 = vmatpush1.bf16.msra.mxu0 %v3152
    %3228 = vmatprep.subr.bf16.mxu0 0
    %3229 = vmatpush1.bf16.msra.mxu0 %v3153
    %3230 = vmatprep.subr.bf16.mxu0 0
    %3231 = vmatpush1.bf16.msra.mxu0 %v3154
    %3232 = vmatprep.subr.bf16.mxu0 0
    %3233 = vmatpush1.bf16.msra.mxu0 %v3155
    %3234 = vmatprep.subr.bf16.mxu0 0
    %3235 = vmatpush1.bf16.msra.mxu0 %v3156
    %3236 = vmatprep.subr.bf16.mxu0 0
    %3237 = vmatpush1.bf16.msra.mxu0 %v3157
    %3238 = vmatprep.mubr.bf16.mxu0 %v2940
    %3239 = vmatmul.mubr.bf16.gmra.mrb[0].mxu0 %v2939
    %v3240 = vpop.f32.mrb[0].mxu0
    %v3241 = vadd.f32 %v3012, %v3240
    %v3242 = vpop.f32.mrb[0].mxu0
    %v3243 = vpop.f32.mrb[0].mxu0
    %v3244 = vpop.f32.mrb[0].mxu0
    %3245 = vdwg.mxu0
    %3246 = vmatprep.subr.bf16.mxu0 0
    %3247 = vmatpush1.bf16.msra.mxu0 %v3158
    %3248 = vmatprep.subr.bf16.mxu0 0
    %3249 = vmatpush1.bf16.msra.mxu0 %v3159
    %3250 = vmatprep.subr.bf16.mxu0 0
    %3251 = vmatpush1.bf16.msra.mxu0 %v3160
    %3252 = vmatprep.subr.bf16.mxu0 0
    %3253 = vmatpush1.bf16.msra.mxu0 %v3161
    %3254 = vmatprep.subr.bf16.mxu0 0
    %3255 = vmatpush1.bf16.msra.mxu0 %v3162
    %3256 = vmatprep.subr.bf16.mxu0 0
    %3257 = vmatpush1.bf16.msra.mxu0 %v3163
    %3258 = vmatprep.subr.bf16.mxu0 0
    %3259 = vmatpush1.bf16.msra.mxu0 %v3164
    %3260 = vmatprep.subr.bf16.mxu0 0
    %3261 = vmatpush1.bf16.msra.mxu0 %v3165
    %3262 = vmatprep.subr.bf16.mxu0 0
    %3263 = vmatpush1.bf16.msra.mxu0 %v3166
    %3264 = vmatprep.subr.bf16.mxu0 0
    %3265 = vmatpush1.bf16.msra.mxu0 %v3167
    %3266 = vmatprep.subr.bf16.mxu0 0
    %3267 = vmatpush1.bf16.msra.mxu0 %v3168
    %3268 = vmatprep.subr.bf16.mxu0 0
    %3269 = vmatpush1.bf16.msra.mxu0 %v3169
    %3270 = vmatprep.subr.bf16.mxu0 0
    %3271 = vmatpush1.bf16.msra.mxu0 %v3170
    %3272 = vmatprep.subr.bf16.mxu0 0
    %3273 = vmatpush1.bf16.msra.mxu0 %v3171
    %3274 = vmatprep.subr.bf16.mxu0 0
    %3275 = vmatpush1.bf16.msra.mxu0 %v3172
    %3276 = vmatprep.subr.bf16.mxu0 0
    %3277 = vmatpush1.bf16.msra.mxu0 %v3173
    %3278 = vmatprep.mubr.bf16.mxu0 %v2942
    %3279 = vmatmul.mubr.bf16.gmra.mrb[0].mxu0 %v2941
    %v3280 = vpop.f32.mrb[0].mxu0
    %v3281 = vadd.f32 %v3241, %v3280
    %v3282 = vpop.f32.mrb[0].mxu0
    %v3283 = vpop.f32.mrb[0].mxu0
    %v3284 = vpop.f32.mrb[0].mxu0
    %3285 = vdwg.mxu0
    %3286 = vst [vmem:[%s7] sm:$0xff] %v3281
    // Predicated region
    $region38: #{_lambda_.1} parent=1 // pred_check
      _
    $region39: #{_lambda_.1} parent=1 // pred_check_branch
      %3288 = sbr.rel (0) target = $region41
    $region40: #{_lambda_.1} parent=1 // pred_region
      _
    $region41: #{_lambda_.1} parent=1 // pred_fallthru
      _
    // Predicated region
    $region42: #{_lambda_.1} parent=1 // pred_check
      _
    $region43: #{_lambda_.1} parent=1 // pred_check_branch
      %3290 = sbr.rel (0) target = $region45
    $region44: #{_lambda_.1} parent=1 // pred_region
      _
    $region45: #{_lambda_.1} parent=1 // pred_fallthru
      _
    %3291 = vsyncpa [#allocation3], 1
    %3292 = vsyncpa [#allocation5], 1

</llo_original>
